<compile_context>
chip_gen: v7x
topology: tpu7x:2x2x1
jax: 0.10.0
libtpu: 0.0.40
codegen_flags: <defaults>
</compile_context>

<pallas_src>
import math

import jax
import jax.numpy as jnp
from jax.experimental import pallas as pl
from jax.experimental.pallas import tpu as pltpu


# ----------------------------------------------------------------------------
# Fused kernel: conv1+ReLU -> conv2+ReLU -> flatten -> Linear + bias + pos-enc
# ----------------------------------------------------------------------------
def _make_fused_kernel(H2):
    Hp = H2 + 1  # conv1 rows kept per row-phase in the VMEM scratch

    def kernel(x4_ref, w1_ref, b1_ref, w2_ref, b2_ref, wl_ref, bl_ref, pe_ref,
               o_ref, y1_ref):
        # x4_ref : (1, 4, Hq, idim) f32   mod-4 row-phase split of the input
        # w1_ref : (3, idim, W1*C) bf16   banded conv1 weights, one slab per kh
        # w2_ref : (3, W1*C, W2*C) bf16   banded conv2 weights, one slab per kh
        # wl_ref : (W2*C, odim)    bf16   Linear weight (flatten order folded in)
        # pe_ref : (H2, odim)      f32    positional encoding
        # y1_ref : (2, Hp, W1*C)   f32    conv1 output, row-phase split (scratch)

        # ---- conv1 + ReLU, row-phase-split output ----
        # y1_ref[rp, i, b*C + c] = relu(conv1)[c, 2*i + rp, b]
        for rp in range(2):
            acc = None
            for kh in range(3):
                a = 2 * rp + kh                  # absolute x-row offset
                q, off = a % 4, a // 4           # mod-4 phase / in-phase offset
                xs = x4_ref[0, q, off:off + Hp, :].astype(jnp.bfloat16)
                part = jnp.dot(xs, w1_ref[kh],
                               preferred_element_type=jnp.float32)
                acc = part if acc is None else acc + part
            y1_ref[rp] = jnp.maximum(acc + b1_ref[...], 0.0)

        # ---- conv2 + ReLU ----
        # acc2[t, f*C + c2] = conv2-pre-activation[c2, t, f]
        acc2 = None
        for kh in range(3):
            ys = y1_ref[kh % 2, kh // 2:kh // 2 + H2, :].astype(jnp.bfloat16)
            part = jnp.dot(ys, w2_ref[kh], preferred_element_type=jnp.float32)
            acc2 = part if acc2 is None else acc2 + part
        y2 = jnp.maximum(acc2 + b2_ref[...], 0.0).astype(jnp.bfloat16)

        # ---- Linear + bias + positional encoding (dropout = eval identity) ----
        out = jnp.dot(y2, wl_ref[...], preferred_element_type=jnp.float32)
        o_ref[0] = (out + bl_ref[...] + pe_ref[...]).astype(o_ref.dtype)

    return kernel


# ----------------------------------------------------------------------------
# Host-side wrapper (weight re-layout is pure XLA glue on small tensors)
# ----------------------------------------------------------------------------
def _positional_encoding(T, d_model):
    assert d_model % 2 == 0, "BasicPositionalEncoding requires even d_model"
    pos = jnp.arange(T, dtype=jnp.float32)[:, None]
    div = jnp.exp(jnp.arange(0, d_model, 2, dtype=jnp.float32)
                  * (-math.log(10000.0) / d_model))
    pe = jnp.zeros((T, d_model), dtype=jnp.float32)
    pe = pe.at[:, 0::2].set(jnp.sin(pos * div))
    pe = pe.at[:, 1::2].set(jnp.cos(pos * div))
    return pe


def conv2d_subsampling(x, params):
    """x: (B, T, idim) float32 -> (B, T', odim), T' = ((T-1)//2 - 1)//2."""
    B, T, idim = x.shape
    w1, b1 = params["w1"], params["b1"]
    w2, b2 = params["w2"], params["b2"]
    wl, bl = params["wl"], params["bl"]
    C = w1.shape[0]                       # 32 conv channels
    odim = wl.shape[0]

    assert T >= 7 and idim >= 7, "need at least one subsampled output position"
    H1 = (T - 3) // 2 + 1
    W1 = (idim - 3) // 2 + 1
    H2 = (H1 - 3) // 2 + 1
    W2 = (W1 - 3) // 2 + 1
    assert wl.shape[1] == C * W2, "Linear in_features must be 32*(((idim-1)//2-1)//2)"

    Hp, Hq = H2 + 1, H2 + 2
    W1C, W2C = W1 * C, W2 * C
    f32, bf16 = jnp.float32, jnp.bfloat16

    # --- mod-4 row-phase split of x (pure permutation; removes every strided
    #     access from the kernel) ---
    x_pad = jnp.pad(x.astype(f32), ((0, 0), (0, 4 * Hq - T), (0, 0)))
    x4 = x_pad.reshape(B, Hq, 4, idim).transpose(0, 2, 1, 3)   # (B, 4, Hq, idim)

    # --- banded conv1 weights: w1b[kh, d, b*C+c] = w1[c,0,kh,d-2b] (else 0) ---
    d_idx = jnp.arange(idim)[:, None]
    col_idx = jnp.arange(W1)[None, :]
    w1t = w1[:, 0, :, :]                                       # (C, kh, kw)
    w1b = jnp.zeros((3, idim, W1, C), f32)
    for kh in range(3):
        for kw in range(3):
            sel = (d_idx == 2 * col_idx + kw).astype(f32)      # (idim, W1)
            w1b = w1b.at[kh].add(sel[:, :, None]
                                 * w1t[:, kh, kw][None, None, :])
    w1b = w1b.reshape(3, idim, W1C).astype(bf16)

    # --- banded conv2 weights: w2b[kh, b*C+c1, f*C+c2] = w2[c2,c1,kh,b-2f] ---
    b_idx = jnp.arange(W1)[:, None]
    f_idx = jnp.arange(W2)[None, :]
    w2b = jnp.zeros((3, W1, C, W2, C), f32)
    for kh in range(3):
        for kw in range(3):
            sel = (b_idx == 2 * f_idx + kw).astype(f32)        # (W1, W2)
            wk = w2[:, :, kh, kw].T                            # (Cin, Cout)
            w2b = w2b.at[kh].add(sel[:, None, :, None]
                                 * wk[None, :, None, :])
    w2b = w2b.reshape(3, W1C, W2C).astype(bf16)

    b1b = jnp.tile(b1, W1).reshape(1, W1C).astype(f32)
    b2b = jnp.tile(b2, W2).reshape(1, W2C).astype(f32)

    # Linear weight with PyTorch's channel-major flatten (c*W2+f) remapped to
    # the kernel's (f*C+c) column order.
    wlp = wl.reshape(odim, C, W2).transpose(2, 1, 0).reshape(W2C, odim).astype(bf16)
    blb = bl.reshape(1, odim).astype(f32)

    pe = _positional_encoding(H2, odim)

    # VMEM budget: block footprint (+ double-buffering / lane-padding headroom).
    block_bytes = (
        2 * (4 * Hq * idim) * 4          # x4 block (double buffered)
        + 2 * (H2 * odim) * 4            # output block
        + (3 * idim * W1C + 3 * W1C * W2C + W2C * odim) * 2   # bf16 weights
        + (W1C + W2C + odim + H2 * odim) * 4                  # biases + pos-enc
        + 2 * Hp * W1C * 4               # y1 scratch
    )
    vmem_limit = int(min(max(4 * block_bytes, 32 * 2**20), 96 * 2**20))

    out = pl.pallas_call(
        _make_fused_kernel(H2),
        out_shape=jax.ShapeDtypeStruct((B, H2, odim), jnp.float32),
        grid=(B,),
        in_specs=[
            pl.BlockSpec((1, 4, Hq, idim), lambda b: (b, 0, 0, 0)),
            pl.BlockSpec((3, idim, W1C), lambda b: (0, 0, 0)),
            pl.BlockSpec((1, W1C), lambda b: (0, 0)),
            pl.BlockSpec((3, W1C, W2C), lambda b: (0, 0, 0)),
            pl.BlockSpec((1, W2C), lambda b: (0, 0)),
            pl.BlockSpec((W2C, odim), lambda b: (0, 0)),
            pl.BlockSpec((1, odim), lambda b: (0, 0)),
            pl.BlockSpec((H2, odim), lambda b: (0, 0)),
        ],
        out_specs=pl.BlockSpec((1, H2, odim), lambda b: (b, 0, 0)),
        scratch_shapes=[pltpu.VMEM((2, Hp, W1C), jnp.float32)],
        compiler_params=pltpu.CompilerParams(
            dimension_semantics=("parallel",),
            vmem_limit_bytes=vmem_limit,
        ),
    )(x4, w1b, b1b, w2b, b2b, wlp, blb, pe)
    return out


# ----------------------------------------------------------------------------
# Parameter init + pure-JAX reference (for a loose self-check)
# ----------------------------------------------------------------------------
def init_params(key, idim, odim=256, cout=32):
    f_out = ((idim - 1) // 2 - 1) // 2
    lin_in = cout * f_out
    ks = jax.random.split(key, 6)
    scale = 0.1
    return {
        "w1": scale * jax.random.normal(ks[0], (cout, 1, 3, 3), jnp.float32),
        "b1": scale * jax.random.normal(ks[1], (cout,), jnp.float32),
        "w2": scale * jax.random.normal(ks[2], (cout, cout, 3, 3), jnp.float32),
        "b2": scale * jax.random.normal(ks[3], (cout,), jnp.float32),
        "wl": scale * jax.random.normal(ks[4], (odim, lin_in), jnp.float32),
        "bl": scale * jax.random.normal(ks[5], (odim,), jnp.float32),
    }


def _ref_conv(z, w, b):
    Bz, Cin, H, W = z.shape
    Ho, Wo = (H - 3) // 2 + 1, (W - 3) // 2 + 1
    cols = []
    for kh in range(3):
        for kw in range(3):
            cols.append(z[:, :, kh:kh + 2 * Ho:2, kw:kw + 2 * Wo:2])
    p = jnp.stack(cols, axis=2).reshape(Bz, Cin * 9, Ho, Wo)
    wm = w.reshape(w.shape[0], -1)
    y = jnp.einsum('om,bmij->boij', wm, p) + b[None, :, None, None]
    return jnp.maximum(y, 0.0)


def _reference(x, params):
    y1 = _ref_conv(x[:, None, :, :], params["w1"], params["b1"])
    y2 = _ref_conv(y1, params["w2"], params["b2"])
    Bz, Cc, T2, F2 = y2.shape
    flat = y2.transpose(0, 2, 1, 3).reshape(Bz, T2, Cc * F2)
    out = flat @ params["wl"].T + params["bl"][None, None, :]
    return out + _positional_encoding(T2, params["wl"].shape[0])[None, :, :]


if __name__ == "__main__":
    B, T, idim, odim = 2, 16, 16, 256   # odim=256 matches the module default
    key = jax.random.PRNGKey(0)
    k_x, k_p = jax.random.split(key)
    x = jax.random.normal(k_x, (B, T, idim), jnp.float32)
    params = init_params(k_p, idim, odim)

    fwd = jax.jit(conv2d_subsampling)
    out = fwd(x, params)
    jax.block_until_ready(out)

    t_out = ((T - 1) // 2 - 1) // 2
    assert out.shape == (B, t_out, odim), out.shape

    # Loose numerical self-check vs a plain-JAX f32 reference (kernel uses
    # bf16 MXU inputs with f32 accumulation, so allow bf16-level slack).
    ref = _reference(x, params)
    err = float(jnp.max(jnp.abs(out - ref)))
    assert err < 0.1, f"kernel/reference mismatch: max abs err = {err}"

    print("KERNEL_OK")
</pallas_src>

<mosaic_0001>
module attributes {stable_mosaic.version = 11 : i64} {
  func.func @kernel(%arg0: i32, %arg1: memref<1x4x5x16xf32, #tpu.memory_space<vmem>>, %arg2: memref<3x16x224xbf16, #tpu.memory_space<vmem>>, %arg3: memref<1x224xf32, #tpu.memory_space<vmem>>, %arg4: memref<3x224x96xbf16, #tpu.memory_space<vmem>>, %arg5: memref<1x96xf32, #tpu.memory_space<vmem>>, %arg6: memref<96x256xbf16, #tpu.memory_space<vmem>>, %arg7: memref<1x256xf32, #tpu.memory_space<vmem>>, %arg8: memref<3x256xf32, #tpu.memory_space<vmem>>, %arg9: memref<1x3x256xf32, #tpu.memory_space<vmem>>, %arg10: memref<2x4x224xf32, #tpu.memory_space<vmem>>) attributes {dimension_semantics = [#tpu.dimension_semantics<parallel>], iteration_bounds = array<i64: 2>, scalar_prefetch = 0 : i64, scratch_operands = 1 : i64, tpu.core_type = #tpu.core_type<tc>, window_params = [{transform_indices = @transform_0, window_bounds = array<i64: 1, 4, 5, 16>}, {pipeline_mode = #tpu.pipeline_mode<synchronous>, transform_indices = @transform_1, window_bounds = array<i64: 3, 16, 224>}, {pipeline_mode = #tpu.pipeline_mode<synchronous>, transform_indices = @transform_2, window_bounds = array<i64: 1, 224>}, {pipeline_mode = #tpu.pipeline_mode<synchronous>, transform_indices = @transform_3, window_bounds = array<i64: 3, 224, 96>}, {pipeline_mode = #tpu.pipeline_mode<synchronous>, transform_indices = @transform_4, window_bounds = array<i64: 1, 96>}, {pipeline_mode = #tpu.pipeline_mode<synchronous>, transform_indices = @transform_5, window_bounds = array<i64: 96, 256>}, {pipeline_mode = #tpu.pipeline_mode<synchronous>, transform_indices = @transform_6, window_bounds = array<i64: 1, 256>}, {pipeline_mode = #tpu.pipeline_mode<synchronous>, transform_indices = @transform_7, window_bounds = array<i64: 3, 256>}, {transform_indices = @transform_8, window_bounds = array<i64: 1, 3, 256>}]} {
    %c0 = arith.constant 0 : index
    %c0_0 = arith.constant 0 : index
    %c0_1 = arith.constant 0 : index
    %c0_2 = arith.constant 0 : index
    %0 = vector.load %arg1[%c0, %c0_0, %c0_1, %c0_2] : memref<1x4x5x16xf32, #tpu.memory_space<vmem>>, vector<1x1x4x16xf32>
    %1 = vector.shape_cast %0 : vector<1x1x4x16xf32> to vector<4x16xf32>
    %2 = arith.truncf %1 : vector<4x16xf32> to vector<4x16xbf16>
    %c0_3 = arith.constant 0 : index
    %c0_4 = arith.constant 0 : index
    %c0_5 = arith.constant 0 : index
    %3 = vector.load %arg2[%c0_3, %c0_4, %c0_5] : memref<3x16x224xbf16, #tpu.memory_space<vmem>>, vector<1x16x224xbf16>
    %4 = vector.shape_cast %3 : vector<1x16x224xbf16> to vector<16x224xbf16>
    %cst = arith.constant dense<0.000000e+00> : vector<4x224xf32>
    %5 = tpu.matmul %2, %4, %cst {dimension_numbers = #tpu.dot_dimension_numbers<[1], [0], [0], [1], [0, 0, 1, 1], [], []>} : vector<4x16xbf16>, vector<16x224xbf16>, vector<4x224xf32> -> vector<4x224xf32>
    %c0_6 = arith.constant 0 : index
    %c1 = arith.constant 1 : index
    %c0_7 = arith.constant 0 : index
    %c0_8 = arith.constant 0 : index
    %6 = vector.load %arg1[%c0_6, %c1, %c0_7, %c0_8] : memref<1x4x5x16xf32, #tpu.memory_space<vmem>>, vector<1x1x4x16xf32>
    %7 = vector.shape_cast %6 : vector<1x1x4x16xf32> to vector<4x16xf32>
    %8 = arith.truncf %7 : vector<4x16xf32> to vector<4x16xbf16>
    %c1_9 = arith.constant 1 : index
    %c0_10 = arith.constant 0 : index
    %c0_11 = arith.constant 0 : index
    %9 = vector.load %arg2[%c1_9, %c0_10, %c0_11] : memref<3x16x224xbf16, #tpu.memory_space<vmem>>, vector<1x16x224xbf16>
    %10 = vector.shape_cast %9 : vector<1x16x224xbf16> to vector<16x224xbf16>
    %cst_12 = arith.constant dense<0.000000e+00> : vector<4x224xf32>
    %11 = tpu.matmul %8, %10, %cst_12 {dimension_numbers = #tpu.dot_dimension_numbers<[1], [0], [0], [1], [0, 0, 1, 1], [], []>} : vector<4x16xbf16>, vector<16x224xbf16>, vector<4x224xf32> -> vector<4x224xf32>
    %12 = arith.addf %5, %11 : vector<4x224xf32>
    %c0_13 = arith.constant 0 : index
    %c2 = arith.constant 2 : index
    %c0_14 = arith.constant 0 : index
    %c0_15 = arith.constant 0 : index
    %13 = vector.load %arg1[%c0_13, %c2, %c0_14, %c0_15] : memref<1x4x5x16xf32, #tpu.memory_space<vmem>>, vector<1x1x4x16xf32>
    %14 = vector.shape_cast %13 : vector<1x1x4x16xf32> to vector<4x16xf32>
    %15 = arith.truncf %14 : vector<4x16xf32> to vector<4x16xbf16>
    %c2_16 = arith.constant 2 : index
    %c0_17 = arith.constant 0 : index
    %c0_18 = arith.constant 0 : index
    %16 = vector.load %arg2[%c2_16, %c0_17, %c0_18] : memref<3x16x224xbf16, #tpu.memory_space<vmem>>, vector<1x16x224xbf16>
    %17 = vector.shape_cast %16 : vector<1x16x224xbf16> to vector<16x224xbf16>
    %cst_19 = arith.constant dense<0.000000e+00> : vector<4x224xf32>
    %18 = tpu.matmul %15, %17, %cst_19 {dimension_numbers = #tpu.dot_dimension_numbers<[1], [0], [0], [1], [0, 0, 1, 1], [], []>} : vector<4x16xbf16>, vector<16x224xbf16>, vector<4x224xf32> -> vector<4x224xf32>
    %19 = arith.addf %12, %18 : vector<4x224xf32>
    %c0_20 = arith.constant 0 : index
    %c0_21 = arith.constant 0 : index
    %20 = vector.load %arg3[%c0_20, %c0_21] : memref<1x224xf32, #tpu.memory_space<vmem>>, vector<1x224xf32>
    %21 = vector.broadcast %20 : vector<1x224xf32> to vector<4x224xf32>
    %22 = arith.addf %19, %21 : vector<4x224xf32>
    %cst_22 = arith.constant 0.000000e+00 : f32
    %23 = vector.broadcast %cst_22 : f32 to vector<4x224xf32>
    %24 = arith.maximumf %22, %23 : vector<4x224xf32>
    %c0_23 = arith.constant 0 : index
    %c0_24 = arith.constant 0 : index
    %c0_25 = arith.constant 0 : index
    %25 = vector.load %arg10[%c0_23, %c0_24, %c0_25] : memref<2x4x224xf32, #tpu.memory_space<vmem>>, vector<1x4x224xf32>
    %26 = vector.shape_cast %25 : vector<1x4x224xf32> to vector<4x224xf32>
    %27 = vector.shape_cast %24 : vector<4x224xf32> to vector<1x4x224xf32>
    tpu.vector_store %arg10[%c0_23, %c0_24, %c0_25], %27 {strides = array<i32>} : memref<2x4x224xf32, #tpu.memory_space<vmem>>, vector<1x4x224xf32>,
    %c0_26 = arith.constant 0 : index
    %c2_27 = arith.constant 2 : index
    %c0_28 = arith.constant 0 : index
    %c0_29 = arith.constant 0 : index
    %28 = vector.load %arg1[%c0_26, %c2_27, %c0_28, %c0_29] : memref<1x4x5x16xf32, #tpu.memory_space<vmem>>, vector<1x1x4x16xf32>
    %29 = vector.shape_cast %28 : vector<1x1x4x16xf32> to vector<4x16xf32>
    %30 = arith.truncf %29 : vector<4x16xf32> to vector<4x16xbf16>
    %c0_30 = arith.constant 0 : index
    %c0_31 = arith.constant 0 : index
    %c0_32 = arith.constant 0 : index
    %31 = vector.load %arg2[%c0_30, %c0_31, %c0_32] : memref<3x16x224xbf16, #tpu.memory_space<vmem>>, vector<1x16x224xbf16>
    %32 = vector.shape_cast %31 : vector<1x16x224xbf16> to vector<16x224xbf16>
    %cst_33 = arith.constant dense<0.000000e+00> : vector<4x224xf32>
    %33 = tpu.matmul %30, %32, %cst_33 {dimension_numbers = #tpu.dot_dimension_numbers<[1], [0], [0], [1], [0, 0, 1, 1], [], []>} : vector<4x16xbf16>, vector<16x224xbf16>, vector<4x224xf32> -> vector<4x224xf32>
    %c0_34 = arith.constant 0 : index
    %c3 = arith.constant 3 : index
    %c0_35 = arith.constant 0 : index
    %c0_36 = arith.constant 0 : index
    %34 = vector.load %arg1[%c0_34, %c3, %c0_35, %c0_36] : memref<1x4x5x16xf32, #tpu.memory_space<vmem>>, vector<1x1x4x16xf32>
    %35 = vector.shape_cast %34 : vector<1x1x4x16xf32> to vector<4x16xf32>
    %36 = arith.truncf %35 : vector<4x16xf32> to vector<4x16xbf16>
    %c1_37 = arith.constant 1 : index
    %c0_38 = arith.constant 0 : index
    %c0_39 = arith.constant 0 : index
    %37 = vector.load %arg2[%c1_37, %c0_38, %c0_39] : memref<3x16x224xbf16, #tpu.memory_space<vmem>>, vector<1x16x224xbf16>
    %38 = vector.shape_cast %37 : vector<1x16x224xbf16> to vector<16x224xbf16>
    %cst_40 = arith.constant dense<0.000000e+00> : vector<4x224xf32>
    %39 = tpu.matmul %36, %38, %cst_40 {dimension_numbers = #tpu.dot_dimension_numbers<[1], [0], [0], [1], [0, 0, 1, 1], [], []>} : vector<4x16xbf16>, vector<16x224xbf16>, vector<4x224xf32> -> vector<4x224xf32>
    %40 = arith.addf %33, %39 : vector<4x224xf32>
    %c0_41 = arith.constant 0 : index
    %c0_42 = arith.constant 0 : index
    %c1_43 = arith.constant 1 : index
    %c0_44 = arith.constant 0 : index
    %41 = vector.load %arg1[%c0_41, %c0_42, %c1_43, %c0_44] : memref<1x4x5x16xf32, #tpu.memory_space<vmem>>, vector<1x1x4x16xf32>
    %42 = vector.shape_cast %41 : vector<1x1x4x16xf32> to vector<4x16xf32>
    %43 = arith.truncf %42 : vector<4x16xf32> to vector<4x16xbf16>
    %c2_45 = arith.constant 2 : index
    %c0_46 = arith.constant 0 : index
    %c0_47 = arith.constant 0 : index
    %44 = vector.load %arg2[%c2_45, %c0_46, %c0_47] : memref<3x16x224xbf16, #tpu.memory_space<vmem>>, vector<1x16x224xbf16>
    %45 = vector.shape_cast %44 : vector<1x16x224xbf16> to vector<16x224xbf16>
    %cst_48 = arith.constant dense<0.000000e+00> : vector<4x224xf32>
    %46 = tpu.matmul %43, %45, %cst_48 {dimension_numbers = #tpu.dot_dimension_numbers<[1], [0], [0], [1], [0, 0, 1, 1], [], []>} : vector<4x16xbf16>, vector<16x224xbf16>, vector<4x224xf32> -> vector<4x224xf32>
    %47 = arith.addf %40, %46 : vector<4x224xf32>
    %c0_49 = arith.constant 0 : index
    %c0_50 = arith.constant 0 : index
    %48 = vector.load %arg3[%c0_49, %c0_50] : memref<1x224xf32, #tpu.memory_space<vmem>>, vector<1x224xf32>
    %49 = vector.broadcast %48 : vector<1x224xf32> to vector<4x224xf32>
    %50 = arith.addf %47, %49 : vector<4x224xf32>
    %cst_51 = arith.constant 0.000000e+00 : f32
    %51 = vector.broadcast %cst_51 : f32 to vector<4x224xf32>
    %52 = arith.maximumf %50, %51 : vector<4x224xf32>
    %c1_52 = arith.constant 1 : index
    %c0_53 = arith.constant 0 : index
    %c0_54 = arith.constant 0 : index
    %53 = vector.load %arg10[%c1_52, %c0_53, %c0_54] : memref<2x4x224xf32, #tpu.memory_space<vmem>>, vector<1x4x224xf32>
    %54 = vector.shape_cast %53 : vector<1x4x224xf32> to vector<4x224xf32>
    %55 = vector.shape_cast %52 : vector<4x224xf32> to vector<1x4x224xf32>
    tpu.vector_store %arg10[%c1_52, %c0_53, %c0_54], %55 {strides = array<i32>} : memref<2x4x224xf32, #tpu.memory_space<vmem>>, vector<1x4x224xf32>,
    %c0_55 = arith.constant 0 : index
    %c0_56 = arith.constant 0 : index
    %c0_57 = arith.constant 0 : index
    %56 = vector.load %arg10[%c0_55, %c0_56, %c0_57] : memref<2x4x224xf32, #tpu.memory_space<vmem>>, vector<1x3x224xf32>
    %57 = vector.shape_cast %56 : vector<1x3x224xf32> to vector<3x224xf32>
    %58 = arith.truncf %57 : vector<3x224xf32> to vector<3x224xbf16>
    %c0_58 = arith.constant 0 : index
    %c0_59 = arith.constant 0 : index
    %c0_60 = arith.constant 0 : index
    %59 = vector.load %arg4[%c0_58, %c0_59, %c0_60] : memref<3x224x96xbf16, #tpu.memory_space<vmem>>, vector<1x224x96xbf16>
    %60 = vector.shape_cast %59 : vector<1x224x96xbf16> to vector<224x96xbf16>
    %cst_61 = arith.constant dense<0.000000e+00> : vector<3x96xf32>
    %61 = tpu.matmul %58, %60, %cst_61 {dimension_numbers = #tpu.dot_dimension_numbers<[1], [0], [0], [1], [0, 0, 1, 1], [], []>} : vector<3x224xbf16>, vector<224x96xbf16>, vector<3x96xf32> -> vector<3x96xf32>
    %c1_62 = arith.constant 1 : index
    %c0_63 = arith.constant 0 : index
    %c0_64 = arith.constant 0 : index
    %62 = vector.load %arg10[%c1_62, %c0_63, %c0_64] : memref<2x4x224xf32, #tpu.memory_space<vmem>>, vector<1x3x224xf32>
    %63 = vector.shape_cast %62 : vector<1x3x224xf32> to vector<3x224xf32>
    %64 = arith.truncf %63 : vector<3x224xf32> to vector<3x224xbf16>
    %c1_65 = arith.constant 1 : index
    %c0_66 = arith.constant 0 : index
    %c0_67 = arith.constant 0 : index
    %65 = vector.load %arg4[%c1_65, %c0_66, %c0_67] : memref<3x224x96xbf16, #tpu.memory_space<vmem>>, vector<1x224x96xbf16>
    %66 = vector.shape_cast %65 : vector<1x224x96xbf16> to vector<224x96xbf16>
    %cst_68 = arith.constant dense<0.000000e+00> : vector<3x96xf32>
    %67 = tpu.matmul %64, %66, %cst_68 {dimension_numbers = #tpu.dot_dimension_numbers<[1], [0], [0], [1], [0, 0, 1, 1], [], []>} : vector<3x224xbf16>, vector<224x96xbf16>, vector<3x96xf32> -> vector<3x96xf32>
    %68 = arith.addf %61, %67 : vector<3x96xf32>
    %c0_69 = arith.constant 0 : index
    %c1_70 = arith.constant 1 : index
    %c0_71 = arith.constant 0 : index
    %69 = vector.load %arg10[%c0_69, %c1_70, %c0_71] : memref<2x4x224xf32, #tpu.memory_space<vmem>>, vector<1x3x224xf32>
    %70 = vector.shape_cast %69 : vector<1x3x224xf32> to vector<3x224xf32>
    %71 = arith.truncf %70 : vector<3x224xf32> to vector<3x224xbf16>
    %c2_72 = arith.constant 2 : index
    %c0_73 = arith.constant 0 : index
    %c0_74 = arith.constant 0 : index
    %72 = vector.load %arg4[%c2_72, %c0_73, %c0_74] : memref<3x224x96xbf16, #tpu.memory_space<vmem>>, vector<1x224x96xbf16>
    %73 = vector.shape_cast %72 : vector<1x224x96xbf16> to vector<224x96xbf16>
    %cst_75 = arith.constant dense<0.000000e+00> : vector<3x96xf32>
    %74 = tpu.matmul %71, %73, %cst_75 {dimension_numbers = #tpu.dot_dimension_numbers<[1], [0], [0], [1], [0, 0, 1, 1], [], []>} : vector<3x224xbf16>, vector<224x96xbf16>, vector<3x96xf32> -> vector<3x96xf32>
    %75 = arith.addf %68, %74 : vector<3x96xf32>
    %c0_76 = arith.constant 0 : index
    %c0_77 = arith.constant 0 : index
    %76 = vector.load %arg5[%c0_76, %c0_77] : memref<1x96xf32, #tpu.memory_space<vmem>>, vector<1x96xf32>
    %77 = vector.broadcast %76 : vector<1x96xf32> to vector<3x96xf32>
    %78 = arith.addf %75, %77 : vector<3x96xf32>
    %cst_78 = arith.constant 0.000000e+00 : f32
    %79 = vector.broadcast %cst_78 : f32 to vector<3x96xf32>
    %80 = arith.maximumf %78, %79 : vector<3x96xf32>
    %81 = arith.truncf %80 : vector<3x96xf32> to vector<3x96xbf16>
    %c0_79 = arith.constant 0 : index
    %c0_80 = arith.constant 0 : index
    %82 = vector.load %arg6[%c0_79, %c0_80] : memref<96x256xbf16, #tpu.memory_space<vmem>>, vector<96x256xbf16>
    %cst_81 = arith.constant dense<0.000000e+00> : vector<3x256xf32>
    %83 = tpu.matmul %81, %82, %cst_81 {dimension_numbers = #tpu.dot_dimension_numbers<[1], [0], [0], [1], [0, 0, 1, 1], [], []>} : vector<3x96xbf16>, vector<96x256xbf16>, vector<3x256xf32> -> vector<3x256xf32>
    %c0_82 = arith.constant 0 : index
    %c0_83 = arith.constant 0 : index
    %84 = vector.load %arg7[%c0_82, %c0_83] : memref<1x256xf32, #tpu.memory_space<vmem>>, vector<1x256xf32>
    %85 = vector.broadcast %84 : vector<1x256xf32> to vector<3x256xf32>
    %86 = arith.addf %83, %85 : vector<3x256xf32>
    %c0_84 = arith.constant 0 : index
    %c0_85 = arith.constant 0 : index
    %87 = vector.load %arg8[%c0_84, %c0_85] : memref<3x256xf32, #tpu.memory_space<vmem>>, vector<3x256xf32>
    %88 = arith.addf %86, %87 : vector<3x256xf32>
    %c0_86 = arith.constant 0 : index
    %c0_87 = arith.constant 0 : index
    %c0_88 = arith.constant 0 : index
    %89 = vector.load %arg9[%c0_86, %c0_87, %c0_88] : memref<1x3x256xf32, #tpu.memory_space<vmem>>, vector<1x3x256xf32>
    %90 = vector.shape_cast %89 : vector<1x3x256xf32> to vector<3x256xf32>
    %91 = vector.shape_cast %88 : vector<3x256xf32> to vector<1x3x256xf32>
    tpu.vector_store %arg9[%c0_86, %c0_87, %c0_88], %91 {strides = array<i32>} : memref<1x3x256xf32, #tpu.memory_space<vmem>>, vector<1x3x256xf32>,
    return
  }
  func.func @transform_0(%arg0: i32) -> (i32, i32, i32, i32) {
    %c0_i32 = arith.constant 0 : i32
    %c0_i32_0 = arith.constant 0 : i32
    %c0_i32_1 = arith.constant 0 : i32
    %c0_i32_2 = arith.constant 0 : i32
    return %arg0, %c0_i32, %c0_i32_0, %c0_i32_1 : i32, i32, i32, i32
  }
  func.func @transform_1(%arg0: i32) -> (i32, i32, i32) {
    %c0_i32 = arith.constant 0 : i32
    %c0_i32_0 = arith.constant 0 : i32
    %c0_i32_1 = arith.constant 0 : i32
    %c0_i32_2 = arith.constant 0 : i32
    return %c0_i32, %c0_i32_0, %c0_i32_1 : i32, i32, i32
  }
  func.func @transform_2(%arg0: i32) -> (i32, i32) {
    %c0_i32 = arith.constant 0 : i32
    %c0_i32_0 = arith.constant 0 : i32
    %c0_i32_1 = arith.constant 0 : i32
    return %c0_i32, %c0_i32_0 : i32, i32
  }
  func.func @transform_3(%arg0: i32) -> (i32, i32, i32) {
    %c0_i32 = arith.constant 0 : i32
    %c0_i32_0 = arith.constant 0 : i32
    %c0_i32_1 = arith.constant 0 : i32
    %c0_i32_2 = arith.constant 0 : i32
    return %c0_i32, %c0_i32_0, %c0_i32_1 : i32, i32, i32
  }
  func.func @transform_4(%arg0: i32) -> (i32, i32) {
    %c0_i32 = arith.constant 0 : i32
    %c0_i32_0 = arith.constant 0 : i32
    %c0_i32_1 = arith.constant 0 : i32
    return %c0_i32, %c0_i32_0 : i32, i32
  }
  func.func @transform_5(%arg0: i32) -> (i32, i32) {
    %c0_i32 = arith.constant 0 : i32
    %c0_i32_0 = arith.constant 0 : i32
    %c0_i32_1 = arith.constant 0 : i32
    return %c0_i32, %c0_i32_0 : i32, i32
  }
  func.func @transform_6(%arg0: i32) -> (i32, i32) {
    %c0_i32 = arith.constant 0 : i32
    %c0_i32_0 = arith.constant 0 : i32
    %c0_i32_1 = arith.constant 0 : i32
    return %c0_i32, %c0_i32_0 : i32, i32
  }
  func.func @transform_7(%arg0: i32) -> (i32, i32) {
    %c0_i32 = arith.constant 0 : i32
    %c0_i32_0 = arith.constant 0 : i32
    %c0_i32_1 = arith.constant 0 : i32
    return %c0_i32, %c0_i32_0 : i32, i32
  }
  func.func @transform_8(%arg0: i32) -> (i32, i32, i32) {
    %c0_i32 = arith.constant 0 : i32
    %c0_i32_0 = arith.constant 0 : i32
    %c0_i32_1 = arith.constant 0 : i32
    return %arg0, %c0_i32, %c0_i32_0 : i32, i32, i32
  }
}

</mosaic_0001>

<llo_original>
// kernel: tile.13
$region0: #{tile.13}
  #allocation0 [shape = 's32[1]{0}', space=sflag, size = 0x4, scoped, tag = 'scoped memory for tile.13']
  %s0 = inlined_call_operand.vmem [shape: f32[32], index: 0, kind: input, shape index: {}]
  %s1 = inlined_call_operand.vmem [shape: f32[7,32], index: 1, kind: output, shape index: {}]
  // Predicated region
  $region2: #{tile.13} parent=0 // pred_check
    _
  $region3: #{tile.13} parent=0 // pred_check_branch
    %3 = sbr.rel (0) target = $region5
  $region4: #{tile.13} parent=0 // pred_region
    _
  $region5: #{tile.13} parent=0 // pred_fallthru
    _
  %v4 = vld [vmem:[%s0] ss:$0 sm:$0xff]
  %5 = vst [vmem:[%s1] sm:$0xff] %v4

// kernel: tile.14
$region0: #{tile.14}
  %s0 = inlined_call_operand.vmem [shape: f32[7,32], index: 0, kind: input, shape index: {}]
  %s1 = inlined_call_operand.vmem [shape: f32[1,224], index: 1, kind: output, shape index: {}]
  $region1: #{tile.14} parent=0
    #allocation0 [shape = 'u8[8192]{0}', space=vmem, size = 0x2000, scoped, tag = 'scoped mem for output reshape']
    %s2 = smov 3
    %v3 = vld [vmem:[%s0] ss:$4 sm:%s2]
    %vm4 = vcmask 261120
    %5 = vst.msk [vmem:[#allocation0] ss:$8 sm:$0x3] %vm4, %v3
    %s6 = scalar_lea.vmem %s0, 3
    %v7 = vld [vmem:[%s6] sm:$0x1]
    %8 = vrot.lane.b32.xlu0 %v7, 96
    %v9 = vpop.permute.xlu0 %8
    %vm10 = vcmask 1048320
    %11 = vst.msk [vmem:[#allocation0] sm:$0x1] %vm10, %v9
    %s12 = scalar_lea.vmem %s0, 2
    %s13 = smov 3
    %v14 = vld [vmem:[%s12] ss:$4 sm:%s13]
    %15 = vrot.lane.b32.xlu0 %v14, 64
    %v16 = vpop.permute.xlu0 %15
    %vm17 = vcmask 785920
    %18 = vst.msk [vmem:[#allocation0] ss:$8 sm:$0x3] %vm17, %v16
    %s19 = scalar_lea.vmem %s0, 1
    %s20 = smov 3
    %v21 = vld [vmem:[%s19] ss:$4 sm:%s20]
    %22 = vrot.lane.b32.xlu0 %v21, 32
    %v23 = vpop.permute.xlu0 %22
    %vm24 = vcmask 523520
    %25 = vst.msk [vmem:[#allocation0] ss:$8 sm:$0x3] %vm24, %v23
    %s27 = sshllo.u32 0, 1
    %v29 = vld [vmem:[#allocation0] sm:%s27]
    %s30 = sshllo.u32 0, 1
    %31 = vst [vmem:[%s1] sm:%s30] %v29
    %s32 = scalar_lea.vmem [#allocation0], 8
    %v33 = vld [vmem:[%s32] sm:%s27]
    %s34 = sshllo.u32 0, 1
    %s35 = scalar_lea.vmem %s1, 1
    %36 = vst [vmem:[%s35] sm:%s34] %v33

// kernel: tile.18
$region0: #{tile.18}
  #allocation0 [shape = 's32[1]{0}', space=sflag, size = 0x4, scoped, tag = 'scoped memory for tile.18']
  %s0 = inlined_call_operand.vmem [shape: f32[32], index: 0, kind: input, shape index: {}]
  %s1 = inlined_call_operand.vmem [shape: f32[3,32], index: 1, kind: output, shape index: {}]
  // Predicated region
  $region2: #{tile.18} parent=0 // pred_check
    _
  $region3: #{tile.18} parent=0 // pred_check_branch
    %3 = sbr.rel (0) target = $region5
  $region4: #{tile.18} parent=0 // pred_region
    _
  $region5: #{tile.18} parent=0 // pred_fallthru
    _
  %v4 = vld [vmem:[%s0] ss:$0 sm:$0xff]
  %5 = vst [vmem:[%s1] sm:$0xf] %v4

// kernel: tile.19
$region0: #{tile.19}
  %s0 = inlined_call_operand.vmem [shape: f32[3,32], index: 0, kind: input, shape index: {}]
  %s1 = inlined_call_operand.vmem [shape: f32[1,96], index: 1, kind: output, shape index: {}]
  $region1: #{tile.19} parent=0
    #allocation0 [shape = 'u8[4096]{0}', space=vmem, size = 0x1000, scoped, tag = 'scoped mem for output reshape']
    #allocation1 [shape = 'u8[4096]{0}', space=vmem, size = 0x1000, scoped, tag = 'scoped mem for input reshape']
    %s3 = sshllo.u32 0, 4
    %v4 = vld [vmem:[%s0] sm:%s3]
    %5 = vst [vmem:[#allocation1] sm:%s3] %v4
    %v6 = vld [vmem:[#allocation1] sm:$0x1]
    %vm7 = vcmask 261120
    %8 = vst.msk [vmem:[#allocation0] sm:$0x1] %vm7, %v6
    %s9 = scalar_lea.vmem [#allocation1], 2
    %v10 = vld [vmem:[%s9] sm:$0x1]
    %11 = vrot.lane.b32.xlu0 %v10, 64
    %v12 = vpop.permute.xlu0 %11
    %vm13 = vcmask 785920
    %14 = vst.msk [vmem:[#allocation0] sm:$0x1] %vm13, %v12
    %s15 = scalar_lea.vmem [#allocation1], 1
    %v16 = vld [vmem:[%s15] sm:$0x1]
    %17 = vrot.lane.b32.xlu0 %v16, 32
    %v18 = vpop.permute.xlu0 %17
    %vm19 = vcmask 523520
    %20 = vst.msk [vmem:[#allocation0] sm:$0x1] %vm19, %v18
    %s22 = sshllo.u32 0, 1
    %v24 = vld [vmem:[#allocation0] sm:%s22]
    %s25 = sshllo.u32 0, 1
    %26 = vst [vmem:[%s1] sm:%s25] %v24

// kernel: conv2d_subsampling.1
$region0: #{conv2d_subsampling.1}
  #allocation0 [shape = 'u32[]', space=smem, size = 0x4, offset = 0x4, fixed_abs, tag = 'smem constant byte address 0x4 - core index']
  #allocation1 [shape = 'u32[144,128]{1,0:T(1,128)}', space=vmem, size = 0x12000, scoped, tag = 'internal scratch']
  #allocation2 [shape = 'f32[2,4,224]{2,1,0:T(4,128)}', space=vmem, size = 0x2000, scoped, tag = 'scratch operand']
  %s0 = inlined_call_operand.vmem [shape: f32[2,4,5,16], index: 0, kind: input, shape index: {}]
  %s1 = inlined_call_operand.vmem [shape: bf16[3,16,224], index: 1, kind: input, shape index: {}]
  %s2 = inlined_call_operand.vmem [shape: f32[1,224], index: 2, kind: input, shape index: {}]
  %s3 = inlined_call_operand.vmem [shape: bf16[3,224,96], index: 3, kind: input, shape index: {}]
  %s4 = inlined_call_operand.vmem [shape: f32[1,96], index: 4, kind: input, shape index: {}]
  %s5 = inlined_call_operand.vmem [shape: bf16[96,256], index: 5, kind: input, shape index: {}]
  %s6 = inlined_call_operand.vmem [shape: f32[1,256], index: 6, kind: input, shape index: {}]
  %s7 = inlined_call_operand.vmem [shape: f32[3,256], index: 7, kind: input, shape index: {}]
  %s8 = inlined_call_operand.vmem [shape: f32[2,3,256], index: 8, kind: output, shape index: {}]
  %s9 = sld [smem:[#allocation0]]
  $region65: #{conv2d_subsampling.1} parent=0
    _
  %s11 = ssub.s32 1, %s9
  %s12 = scalar_select 0, %s11, %s9
  loop: start=0, step=1, limit=4
  $region2: #{conv2d_subsampling.1} parent=0 // loop_pre_header
    _
  $region3: #{conv2d_subsampling.1} parent=0 // loop_header
    %s14 = sphi 0, %s18
    %p15 = scmp.ge.s32.totalorder %s14, 4
    %s24 = sphi 0, %s26
    %s27 = sphi 0, %s24
    %s28 = sphi 0, %s27
    %s44 = sphi 0, %s28
    %s48 = sphi 0, %s48
    %s50 = sphi 0, %s48
    %s51 = sphi 0, %s50
    %s65 = sphi 0, %s51
    %s69 = sphi 0, %s69
    %s71 = sphi 0, %s69
    %s72 = sphi 0, %s71
    %s86 = sphi 0, %s72
    %s90 = sphi 0, %s90
    %s92 = sphi 0, %s90
    %s93 = sphi 0, %s92
    %s107 = sphi 0, %s93
    %s111 = sphi 0, %s111
    %s113 = sphi 0, %s111
    %s114 = sphi 0, %s113
    %s128 = sphi 0, %s114
    %s132 = sphi 0, %s132
    %s134 = sphi 0, %s132
    %s135 = sphi 0, %s134
    %s149 = sphi 0, %s135
    %s153 = sphi 0, %s153
    %s155 = sphi 0, %s153
    %s156 = sphi 0, %s155
    %s170 = sphi 0, %s156
    %s174 = sphi 0, %s174
    %s176 = sphi 0, %s174
    %s177 = sphi 0, %s176
    %s191 = sphi 0, %s177
    %s197 = sphi 0, %s199
    %s200 = sphi 0, %s197
    %s201 = sphi 0, %s200
    %s217 = sphi 0, %s201
  $region4: #{conv2d_subsampling.1} parent=0 // loop_header_branch
    %17 = sbr.rel (%p15) target = $region8
  $region5: #{conv2d_subsampling.1} parent=0 // loop_body
    %s19 = ssub.s32 %s14, 1
    %s20 = ssub.s32 %s14, 2
    %s21 = sadd.s32 %s14, 1
    %s22 = ssub.s32 %s14, %s21
    %p23 = scmp.eq.s32.totalorder %s22, 0
    %s25 = sadd.s32 %s24, 1
    %s26 = scalar_select %p23, %s24, %s25
    %p29 = pneg %p23
    %p30 = scmp.eq.s32.totalorder %s14, 1
    %p31 = por %p29, %p30
    %p32 = scmp.ne.s32.totalorder %s24, %s27
    %p33 = scmp.eq.s32.totalorder %s14, 0
    %p34 = por %p32, %p33
    %p35 = scmp.ne.s32.totalorder %s24, %s27
    %p36 = scmp.eq.s32.totalorder %s19, 1
    %p37 = por %p35, %p36
    %p38 = scmp.ne.s32.totalorder %s27, %s28
    %p39 = scmp.eq.s32.totalorder %s19, 0
    %p40 = por %p38, %p39
    %p41 = scmp.ne.s32.totalorder %s27, %s28
    %p42 = scmp.eq.s32.totalorder %s20, 1
    %p43 = por %p41, %p42
    %p45 = scmp.ne.s32.totalorder %s28, %s44
    %p46 = scmp.eq.s32.totalorder %s20, 0
    %p47 = por %p45, %p46
    %s49 = sadd.s32 %s48, 1
    %p52 = scmp.eq.s32.totalorder %s14, 1
    %p53 = scmp.ne.s32.totalorder %s48, %s50
    %p54 = scmp.eq.s32.totalorder %s14, 0
    %p55 = por %p53, %p54
    %p56 = scmp.ne.s32.totalorder %s48, %s50
    %p57 = scmp.eq.s32.totalorder %s19, 1
    %p58 = por %p56, %p57
    %p59 = scmp.ne.s32.totalorder %s50, %s51
    %p60 = scmp.eq.s32.totalorder %s19, 0
    %p61 = por %p59, %p60
    %p62 = scmp.ne.s32.totalorder %s50, %s51
    %p63 = scmp.eq.s32.totalorder %s20, 1
    %p64 = por %p62, %p63
    %p66 = scmp.ne.s32.totalorder %s51, %s65
    %p67 = scmp.eq.s32.totalorder %s20, 0
    %p68 = por %p66, %p67
    %s70 = sadd.s32 %s69, 1
    %p73 = scmp.eq.s32.totalorder %s14, 1
    %p74 = scmp.ne.s32.totalorder %s69, %s71
    %p75 = scmp.eq.s32.totalorder %s14, 0
    %p76 = por %p74, %p75
    %p77 = scmp.ne.s32.totalorder %s69, %s71
    %p78 = scmp.eq.s32.totalorder %s19, 1
    %p79 = por %p77, %p78
    %p80 = scmp.ne.s32.totalorder %s71, %s72
    %p81 = scmp.eq.s32.totalorder %s19, 0
    %p82 = por %p80, %p81
    %p83 = scmp.ne.s32.totalorder %s71, %s72
    %p84 = scmp.eq.s32.totalorder %s20, 1
    %p85 = por %p83, %p84
    %p87 = scmp.ne.s32.totalorder %s72, %s86
    %p88 = scmp.eq.s32.totalorder %s20, 0
    %p89 = por %p87, %p88
    %s91 = sadd.s32 %s90, 1
    %p94 = scmp.eq.s32.totalorder %s14, 1
    %p95 = scmp.ne.s32.totalorder %s90, %s92
    %p96 = scmp.eq.s32.totalorder %s14, 0
    %p97 = por %p95, %p96
    %p98 = scmp.ne.s32.totalorder %s90, %s92
    %p99 = scmp.eq.s32.totalorder %s19, 1
    %p100 = por %p98, %p99
    %p101 = scmp.ne.s32.totalorder %s92, %s93
    %p102 = scmp.eq.s32.totalorder %s19, 0
    %p103 = por %p101, %p102
    %p104 = scmp.ne.s32.totalorder %s92, %s93
    %p105 = scmp.eq.s32.totalorder %s20, 1
    %p106 = por %p104, %p105
    %p108 = scmp.ne.s32.totalorder %s93, %s107
    %p109 = scmp.eq.s32.totalorder %s20, 0
    %p110 = por %p108, %p109
    %s112 = sadd.s32 %s111, 1
    %p115 = scmp.eq.s32.totalorder %s14, 1
    %p116 = scmp.ne.s32.totalorder %s111, %s113
    %p117 = scmp.eq.s32.totalorder %s14, 0
    %p118 = por %p116, %p117
    %p119 = scmp.ne.s32.totalorder %s111, %s113
    %p120 = scmp.eq.s32.totalorder %s19, 1
    %p121 = por %p119, %p120
    %p122 = scmp.ne.s32.totalorder %s113, %s114
    %p123 = scmp.eq.s32.totalorder %s19, 0
    %p124 = por %p122, %p123
    %p125 = scmp.ne.s32.totalorder %s113, %s114
    %p126 = scmp.eq.s32.totalorder %s20, 1
    %p127 = por %p125, %p126
    %p129 = scmp.ne.s32.totalorder %s114, %s128
    %p130 = scmp.eq.s32.totalorder %s20, 0
    %p131 = por %p129, %p130
    %s133 = sadd.s32 %s132, 1
    %p136 = scmp.eq.s32.totalorder %s14, 1
    %p137 = scmp.ne.s32.totalorder %s132, %s134
    %p138 = scmp.eq.s32.totalorder %s14, 0
    %p139 = por %p137, %p138
    %p140 = scmp.ne.s32.totalorder %s132, %s134
    %p141 = scmp.eq.s32.totalorder %s19, 1
    %p142 = por %p140, %p141
    %p143 = scmp.ne.s32.totalorder %s134, %s135
    %p144 = scmp.eq.s32.totalorder %s19, 0
    %p145 = por %p143, %p144
    %p146 = scmp.ne.s32.totalorder %s134, %s135
    %p147 = scmp.eq.s32.totalorder %s20, 1
    %p148 = por %p146, %p147
    %p150 = scmp.ne.s32.totalorder %s135, %s149
    %p151 = scmp.eq.s32.totalorder %s20, 0
    %p152 = por %p150, %p151
    %s154 = sadd.s32 %s153, 1
    %p157 = scmp.eq.s32.totalorder %s14, 1
    %p158 = scmp.ne.s32.totalorder %s153, %s155
    %p159 = scmp.eq.s32.totalorder %s14, 0
    %p160 = por %p158, %p159
    %p161 = scmp.ne.s32.totalorder %s153, %s155
    %p162 = scmp.eq.s32.totalorder %s19, 1
    %p163 = por %p161, %p162
    %p164 = scmp.ne.s32.totalorder %s155, %s156
    %p165 = scmp.eq.s32.totalorder %s19, 0
    %p166 = por %p164, %p165
    %p167 = scmp.ne.s32.totalorder %s155, %s156
    %p168 = scmp.eq.s32.totalorder %s20, 1
    %p169 = por %p167, %p168
    %p171 = scmp.ne.s32.totalorder %s156, %s170
    %p172 = scmp.eq.s32.totalorder %s20, 0
    %p173 = por %p171, %p172
    %s175 = sadd.s32 %s174, 1
    %p178 = scmp.eq.s32.totalorder %s14, 1
    %p179 = scmp.ne.s32.totalorder %s174, %s176
    %p180 = scmp.eq.s32.totalorder %s14, 0
    %p181 = por %p179, %p180
    %p182 = scmp.ne.s32.totalorder %s174, %s176
    %p183 = scmp.eq.s32.totalorder %s19, 1
    %p184 = por %p182, %p183
    %p185 = scmp.ne.s32.totalorder %s176, %s177
    %p186 = scmp.eq.s32.totalorder %s19, 0
    %p187 = por %p185, %p186
    %p188 = scmp.ne.s32.totalorder %s176, %s177
    %p189 = scmp.eq.s32.totalorder %s20, 1
    %p190 = por %p188, %p189
    %p192 = scmp.ne.s32.totalorder %s177, %s191
    %p193 = scmp.eq.s32.totalorder %s20, 0
    %p194 = por %p192, %p193
    %s195 = ssub.s32 %s14, %s21
    %p196 = scmp.eq.s32.totalorder %s195, 0
    %s198 = sadd.s32 %s197, 1
    %s199 = scalar_select %p196, %s197, %s198
    %p202 = pneg %p196
    %p203 = scmp.eq.s32.totalorder %s14, 1
    %p204 = por %p202, %p203
    %p205 = scmp.ne.s32.totalorder %s197, %s200
    %p206 = scmp.eq.s32.totalorder %s14, 0
    %p207 = por %p205, %p206
    %p208 = scmp.ne.s32.totalorder %s197, %s200
    %p209 = scmp.eq.s32.totalorder %s19, 1
    %p210 = por %p208, %p209
    %p211 = scmp.ne.s32.totalorder %s200, %s201
    %p212 = scmp.eq.s32.totalorder %s19, 0
    %p213 = por %p211, %p212
    %p214 = scmp.ne.s32.totalorder %s200, %s201
    %p215 = scmp.eq.s32.totalorder %s20, 1
    %p216 = por %p214, %p215
    %p218 = scmp.ne.s32.totalorder %s201, %s217
    %p219 = scmp.eq.s32.totalorder %s20, 0
    %p220 = por %p218, %p219
    %p221 = scmp.le.s32.totalorder 1, %s14
    %p222 = scmp.lt.s32.totalorder %s14, 3
    %p223 = pnand %p221, %p222
    %p224 = pneg %p223
    // Predicated region
    $region9: #{conv2d_subsampling.1} parent=5 // pred_check
      _
    $region10: #{conv2d_subsampling.1} parent=5 // pred_check_branch
      %226 = sbr.rel (%p223) target = $region12
    $region11: #{conv2d_subsampling.1} parent=5 // pred_region
      %s227 = ssub.s32 %s14, 1
      // Predicated region
      $region13: #{conv2d_subsampling.1} parent=11 // pred_check
        %p228 = pneg %p61
      $region14: #{conv2d_subsampling.1} parent=11 // pred_check_branch
        %230 = sbr.rel (%p228) target = $region16
      $region15: #{conv2d_subsampling.1} parent=11 // pred_region
        _
      $region16: #{conv2d_subsampling.1} parent=11 // pred_fallthru
        _
      // Predicated region
      $region17: #{conv2d_subsampling.1} parent=11 // pred_check
        %p231 = pneg %p82
      $region18: #{conv2d_subsampling.1} parent=11 // pred_check_branch
        %233 = sbr.rel (%p231) target = $region20
      $region19: #{conv2d_subsampling.1} parent=11 // pred_region
        _
      $region20: #{conv2d_subsampling.1} parent=11 // pred_fallthru
        _
      // Predicated region
      $region21: #{conv2d_subsampling.1} parent=11 // pred_check
        %p234 = pneg %p103
      $region22: #{conv2d_subsampling.1} parent=11 // pred_check_branch
        %236 = sbr.rel (%p234) target = $region24
      $region23: #{conv2d_subsampling.1} parent=11 // pred_region
        _
      $region24: #{conv2d_subsampling.1} parent=11 // pred_fallthru
        _
      // Predicated region
      $region25: #{conv2d_subsampling.1} parent=11 // pred_check
        %p237 = pneg %p124
      $region26: #{conv2d_subsampling.1} parent=11 // pred_check_branch
        %239 = sbr.rel (%p237) target = $region28
      $region27: #{conv2d_subsampling.1} parent=11 // pred_region
        _
      $region28: #{conv2d_subsampling.1} parent=11 // pred_fallthru
        _
      // Predicated region
      $region29: #{conv2d_subsampling.1} parent=11 // pred_check
        %p240 = pneg %p145
      $region30: #{conv2d_subsampling.1} parent=11 // pred_check_branch
        %242 = sbr.rel (%p240) target = $region32
      $region31: #{conv2d_subsampling.1} parent=11 // pred_region
        _
      $region32: #{conv2d_subsampling.1} parent=11 // pred_fallthru
        _
      // Predicated region
      $region33: #{conv2d_subsampling.1} parent=11 // pred_check
        %p243 = pneg %p166
      $region34: #{conv2d_subsampling.1} parent=11 // pred_check_branch
        %245 = sbr.rel (%p243) target = $region36
      $region35: #{conv2d_subsampling.1} parent=11 // pred_region
        _
      $region36: #{conv2d_subsampling.1} parent=11 // pred_fallthru
        _
      // Predicated region
      $region37: #{conv2d_subsampling.1} parent=11 // pred_check
        %p246 = pneg %p187
      $region38: #{conv2d_subsampling.1} parent=11 // pred_check_branch
        %248 = sbr.rel (%p246) target = $region40
      $region39: #{conv2d_subsampling.1} parent=11 // pred_region
        _
      $region40: #{conv2d_subsampling.1} parent=11 // pred_fallthru
        _
    $region12: #{conv2d_subsampling.1} parent=5 // pred_fallthru
      _
    %p249 = scmp.lt.s32.totalorder %s14, 2
    // Predicated region
    $region41: #{conv2d_subsampling.1} parent=5 // pred_check
      %p250 = pneg %p249
    $region42: #{conv2d_subsampling.1} parent=5 // pred_check_branch
      %252 = sbr.rel (%p250) target = $region44
    $region43: #{conv2d_subsampling.1} parent=5 // pred_region
      // Predicated region
      $region45: #{conv2d_subsampling.1} parent=43 // pred_check
        %p253 = pneg %p34
      $region46: #{conv2d_subsampling.1} parent=43 // pred_check_branch
        %255 = sbr.rel (%p253) target = $region48
      $region47: #{conv2d_subsampling.1} parent=43 // pred_region
        %p256 = scmp.lt.s32.totalorder %s14, 1
        %s257 = scalar_select %p256, %s14, 1
        %s258 = smul.addr %s257, 4
        %s259 = smul.addr %s258, 8
        %s260 = scalar_lea.vmem %s0, %s259
      $region48: #{conv2d_subsampling.1} parent=43 // pred_fallthru
        _
    $region44: #{conv2d_subsampling.1} parent=5 // pred_fallthru
      _
    %p261 = scmp.le.s32.totalorder 1, %s14
    %p262 = scmp.lt.s32.totalorder %s14, 3
    %p263 = pnand %p261, %p262
    %p264 = pneg %p263
    // Predicated region
    $region49: #{conv2d_subsampling.1} parent=5 // pred_check
      _
    $region50: #{conv2d_subsampling.1} parent=5 // pred_check_branch
      %266 = sbr.rel (%p263) target = $region52
    $region51: #{conv2d_subsampling.1} parent=5 // pred_region
      %s267 = ssub.s32 %s14, 1
      %p268 = scmp.lt.s32.totalorder %s19, 1
      %s269 = scalar_select %p268, %s19, 1
      %s270 = smul.addr %s269, 4
      %s271 = smul.addr %s270, 8
      %s272 = scalar_lea.vmem %s0, %s271
      %p273 = pneg %p40
      %p274 = pneg %p37
      %p275 = pneg %p61
      %p276 = pneg %p58
      %p277 = pneg %p82
      %p278 = pneg %p79
      %p279 = pneg %p103
      %p280 = pneg %p100
      %p281 = pneg %p124
      %p282 = pneg %p121
      %p283 = pneg %p145
      %p284 = pneg %p142
      %p285 = pneg %p166
      %p286 = pneg %p163
      %p287 = pneg %p187
      %p288 = pneg %p184
      %p289 = pneg %p213
      %p290 = pneg %p210
      %p291 = scmp.lt.s32.totalorder %s19, 1
      %s292 = scalar_select %p291, %s19, 1
      %s293 = smul.addr %s292, 2
      %s294 = smul.addr %s293, 4
      %s295 = scalar_lea.vmem %s8, %s294
      %p296 = scmp.lt.s32.totalorder %s19, 1
      %s297 = scalar_select %p296, %s19, 1
      %s298 = smul.addr %s297, 4
      %s299 = smul.addr %s298, 8
      %s300 = scalar_lea.vmem %s0, %s299
      %p301 = scmp.lt.s32.totalorder %s19, 1
      %s302 = scalar_select %p301, %s19, 1
      %s303 = smul.addr %s302, 2
      %s304 = smul.addr %s303, 4
      %s305 = scalar_lea.vmem %s8, %s304
      %v307 = vld [vmem:[%s300] sm:$0xf]
      %v308 = vpack.c.bf16 %v307, %v307
      %v309 = vld [vmem:[%s1] sm:$0xff]
      %v310 = vld [vmem:[%s1 + $0x8] sm:$0xff]
      %s311 = scalar_lea.vmem %s300, 8
      %v312 = vld [vmem:[%s311] sm:$0xf]
      %v313 = vpack.c.bf16 %v312, %v312
      %s314 = scalar_lea.vmem %s1, 16
      %v315 = vld [vmem:[%s314] sm:$0xff]
      %v316 = vld [vmem:[%s314 + $0x8] sm:$0xff]
      %v319 = vunpack.c.l.b16 %v315
      %v320 = vunpack.c.h.b16 %v315
      %v321 = vunpack.c.l.b16 %v316
      %v322 = vunpack.c.h.b16 %v316
      %v323 = vpack.c.b16 %v321, %v319
      %v324 = vpack.c.b16 %v322, %v320
      %vm327 = vcmask 130048
      %v329 = vsel %vm327, %v313, 0
      %331 = vmatprep.subr.bf16.mxu0 %v324
      %332 = vmatpush1.bf16.msra.mxu0 %v323
      %333 = vmatprep.subr.bf16.mxu0 0
      %334 = vmatpush1.bf16.msra.mxu0 0
      %335 = vmatprep.subr.bf16.mxu0 0
      %336 = vmatpush1.bf16.msra.mxu0 0
      %337 = vmatprep.subr.bf16.mxu0 0
      %338 = vmatpush1.bf16.msra.mxu0 0
      %339 = vmatprep.subr.bf16.mxu0 0
      %340 = vmatpush1.bf16.msra.mxu0 0
      %341 = vmatprep.subr.bf16.mxu0 0
      %342 = vmatpush1.bf16.msra.mxu0 0
      %343 = vmatprep.subr.bf16.mxu0 0
      %344 = vmatpush1.bf16.msra.mxu0 0
      %345 = vmatprep.subr.bf16.mxu0 0
      %346 = vmatpush1.bf16.msra.mxu0 0
      %347 = vmatprep.subr.bf16.mxu0 0
      %348 = vmatpush1.bf16.msra.mxu0 0
      %349 = vmatprep.subr.bf16.mxu0 0
      %350 = vmatpush1.bf16.msra.mxu0 0
      %351 = vmatprep.subr.bf16.mxu0 0
      %352 = vmatpush1.bf16.msra.mxu0 0
      %353 = vmatprep.subr.bf16.mxu0 0
      %354 = vmatpush1.bf16.msra.mxu0 0
      %355 = vmatprep.subr.bf16.mxu0 0
      %356 = vmatpush1.bf16.msra.mxu0 0
      %357 = vmatprep.subr.bf16.mxu0 0
      %358 = vmatpush1.bf16.msra.mxu0 0
      %359 = vmatprep.subr.bf16.mxu0 0
      %360 = vmatpush1.bf16.msra.mxu0 0
      %361 = vmatprep.subr.bf16.mxu0 0
      %362 = vmatpush1.bf16.msra.mxu0 0
      %363 = vmatprep.mubr.bf16.mxu0 0
      %364 = vmatmul.mubr.bf16.gmra.mrb[0].mxu0 %v329
      %v365 = vpop.f32.mrb[0].mxu0
      %v366 = vadd.f32 0.0, %v365
      %v367 = vpop.f32.mrb[0].mxu0
      %v368 = vadd.f32 0.0, %v367
      %v369 = vpop.f32.mrb[0].mxu0
      %v370 = vpop.f32.mrb[0].mxu0
      %371 = vdwg.mxu0
      %v374 = vunpack.c.l.b16 %v309
      %v375 = vunpack.c.h.b16 %v309
      %v376 = vunpack.c.l.b16 %v310
      %v377 = vunpack.c.h.b16 %v310
      %v378 = vpack.c.b16 %v376, %v374
      %v379 = vpack.c.b16 %v377, %v375
      %v383 = vsel %vm327, %v308, 0
      %385 = vmatprep.subr.bf16.mxu0 %v379
      %386 = vmatpush1.bf16.msra.mxu0 %v378
      %387 = vmatprep.subr.bf16.mxu0 0
      %388 = vmatpush1.bf16.msra.mxu0 0
      %389 = vmatprep.subr.bf16.mxu0 0
      %390 = vmatpush1.bf16.msra.mxu0 0
      %391 = vmatprep.subr.bf16.mxu0 0
      %392 = vmatpush1.bf16.msra.mxu0 0
      %393 = vmatprep.subr.bf16.mxu0 0
      %394 = vmatpush1.bf16.msra.mxu0 0
      %395 = vmatprep.subr.bf16.mxu0 0
      %396 = vmatpush1.bf16.msra.mxu0 0
      %397 = vmatprep.subr.bf16.mxu0 0
      %398 = vmatpush1.bf16.msra.mxu0 0
      %399 = vmatprep.subr.bf16.mxu0 0
      %400 = vmatpush1.bf16.msra.mxu0 0
      %401 = vmatprep.subr.bf16.mxu0 0
      %402 = vmatpush1.bf16.msra.mxu0 0
      %403 = vmatprep.subr.bf16.mxu0 0
      %404 = vmatpush1.bf16.msra.mxu0 0
      %405 = vmatprep.subr.bf16.mxu0 0
      %406 = vmatpush1.bf16.msra.mxu0 0
      %407 = vmatprep.subr.bf16.mxu0 0
      %408 = vmatpush1.bf16.msra.mxu0 0
      %409 = vmatprep.subr.bf16.mxu0 0
      %410 = vmatpush1.bf16.msra.mxu0 0
      %411 = vmatprep.subr.bf16.mxu0 0
      %412 = vmatpush1.bf16.msra.mxu0 0
      %413 = vmatprep.subr.bf16.mxu0 0
      %414 = vmatpush1.bf16.msra.mxu0 0
      %415 = vmatprep.subr.bf16.mxu0 0
      %416 = vmatpush1.bf16.msra.mxu0 0
      %417 = vmatprep.mubr.bf16.mxu0 0
      %418 = vmatmul.mubr.bf16.gmra.mrb[0].mxu0 %v383
      %v419 = vpop.f32.mrb[0].mxu0
      %v420 = vadd.f32 %v366, %v419
      %v421 = vpop.f32.mrb[0].mxu0
      %v422 = vadd.f32 %v368, %v421
      %v423 = vpop.f32.mrb[0].mxu0
      %v424 = vpop.f32.mrb[0].mxu0
      %425 = vdwg.mxu0
      %s426 = scalar_lea.vmem %s300, 16
      %v427 = vld [vmem:[%s426] sm:$0xf]
      %v428 = vpack.c.bf16 %v427, %v427
      %s429 = scalar_lea.vmem %s1, 32
      %v430 = vld [vmem:[%s429] sm:$0xff]
      %v431 = vld [vmem:[%s429 + $0x8] sm:$0xff]
      %v434 = vunpack.c.l.b16 %v430
      %v435 = vunpack.c.h.b16 %v430
      %v436 = vunpack.c.l.b16 %v431
      %v437 = vunpack.c.h.b16 %v431
      %v438 = vpack.c.b16 %v436, %v434
      %v439 = vpack.c.b16 %v437, %v435
      %v443 = vsel %vm327, %v428, 0
      %445 = vmatprep.subr.bf16.mxu0 %v439
      %446 = vmatpush1.bf16.msra.mxu0 %v438
      %447 = vmatprep.subr.bf16.mxu0 0
      %448 = vmatpush1.bf16.msra.mxu0 0
      %449 = vmatprep.subr.bf16.mxu0 0
      %450 = vmatpush1.bf16.msra.mxu0 0
      %451 = vmatprep.subr.bf16.mxu0 0
      %452 = vmatpush1.bf16.msra.mxu0 0
      %453 = vmatprep.subr.bf16.mxu0 0
      %454 = vmatpush1.bf16.msra.mxu0 0
      %455 = vmatprep.subr.bf16.mxu0 0
      %456 = vmatpush1.bf16.msra.mxu0 0
      %457 = vmatprep.subr.bf16.mxu0 0
      %458 = vmatpush1.bf16.msra.mxu0 0
      %459 = vmatprep.subr.bf16.mxu0 0
      %460 = vmatpush1.bf16.msra.mxu0 0
      %461 = vmatprep.subr.bf16.mxu0 0
      %462 = vmatpush1.bf16.msra.mxu0 0
      %463 = vmatprep.subr.bf16.mxu0 0
      %464 = vmatpush1.bf16.msra.mxu0 0
      %465 = vmatprep.subr.bf16.mxu0 0
      %466 = vmatpush1.bf16.msra.mxu0 0
      %467 = vmatprep.subr.bf16.mxu0 0
      %468 = vmatpush1.bf16.msra.mxu0 0
      %469 = vmatprep.subr.bf16.mxu0 0
      %470 = vmatpush1.bf16.msra.mxu0 0
      %471 = vmatprep.subr.bf16.mxu0 0
      %472 = vmatpush1.bf16.msra.mxu0 0
      %473 = vmatprep.subr.bf16.mxu0 0
      %474 = vmatpush1.bf16.msra.mxu0 0
      %475 = vmatprep.subr.bf16.mxu0 0
      %476 = vmatpush1.bf16.msra.mxu0 0
      %477 = vmatprep.mubr.bf16.mxu0 0
      %478 = vmatmul.mubr.bf16.gmra.mrb[0].mxu0 %v443
      %v479 = vpop.f32.mrb[0].mxu0
      %v480 = vadd.f32 0.0, %v479
      %v481 = vpop.f32.mrb[0].mxu0
      %v482 = vadd.f32 0.0, %v481
      %v483 = vpop.f32.mrb[0].mxu0
      %v484 = vpop.f32.mrb[0].mxu0
      %485 = vdwg.mxu0
      %v486 = vadd.f32 %v420, %v480
      %v487 = vadd.f32 %v422, %v482
      %v488 = vld [vmem:[%s2] sm:$0x3]
      %v490 = vlaneseq
      %v491 = vshrl.u32 %v490, 7
      %v492 = vsub.s32 0, %v491
      %v493 = vrot.slane %v488, %v492
      %v494 = vlaneseq
      %v495 = vshrl.u32 %v494, 7
      %v496 = vsub.s32 1, %v495
      %v497 = vrot.slane %v488, %v496
      %v500 = vadd.f32 %v486, %v493
      %v501 = vadd.f32 %v487, %v497
      %v502 = vmax.f32 %v500, 0.0
      %v503 = vmax.f32 %v501, 0.0
      %v506 = vcombine.low %v502, %v503
      %vm508 = vcmask 1043456
      %vm509 = vcmask 785412
      %vm510 = vmor %vm509, %vm508
      %511 = vst.msk [vmem:[#allocation2] sm:$0xff] %vm510, %v506
      %v512 = vld [vmem:[%s426] sm:$0xf]
      %v513 = vpack.c.bf16 %v512, %v512
      %v514 = vld [vmem:[%s1] sm:$0xff]
      %v515 = vld [vmem:[%s1 + $0x8] sm:$0xff]
      %s516 = scalar_lea.vmem %s300, 24
      %v517 = vld [vmem:[%s516] sm:$0xf]
      %v518 = vpack.c.bf16 %v517, %v517
      %v519 = vld [vmem:[%s314] sm:$0xff]
      %v520 = vld [vmem:[%s314 + $0x8] sm:$0xff]
      %v523 = vunpack.c.l.b16 %v519
      %v524 = vunpack.c.h.b16 %v519
      %v525 = vunpack.c.l.b16 %v520
      %v526 = vunpack.c.h.b16 %v520
      %v527 = vpack.c.b16 %v525, %v523
      %v528 = vpack.c.b16 %v526, %v524
      %v532 = vsel %vm327, %v518, 0
      %534 = vmatprep.subr.bf16.mxu0 %v528
      %535 = vmatpush1.bf16.msra.mxu0 %v527
      %536 = vmatprep.subr.bf16.mxu0 0
      %537 = vmatpush1.bf16.msra.mxu0 0
      %538 = vmatprep.subr.bf16.mxu0 0
      %539 = vmatpush1.bf16.msra.mxu0 0
      %540 = vmatprep.subr.bf16.mxu0 0
      %541 = vmatpush1.bf16.msra.mxu0 0
      %542 = vmatprep.subr.bf16.mxu0 0
      %543 = vmatpush1.bf16.msra.mxu0 0
      %544 = vmatprep.subr.bf16.mxu0 0
      %545 = vmatpush1.bf16.msra.mxu0 0
      %546 = vmatprep.subr.bf16.mxu0 0
      %547 = vmatpush1.bf16.msra.mxu0 0
      %548 = vmatprep.subr.bf16.mxu0 0
      %549 = vmatpush1.bf16.msra.mxu0 0
      %550 = vmatprep.subr.bf16.mxu0 0
      %551 = vmatpush1.bf16.msra.mxu0 0
      %552 = vmatprep.subr.bf16.mxu0 0
      %553 = vmatpush1.bf16.msra.mxu0 0
      %554 = vmatprep.subr.bf16.mxu0 0
      %555 = vmatpush1.bf16.msra.mxu0 0
      %556 = vmatprep.subr.bf16.mxu0 0
      %557 = vmatpush1.bf16.msra.mxu0 0
      %558 = vmatprep.subr.bf16.mxu0 0
      %559 = vmatpush1.bf16.msra.mxu0 0
      %560 = vmatprep.subr.bf16.mxu0 0
      %561 = vmatpush1.bf16.msra.mxu0 0
      %562 = vmatprep.subr.bf16.mxu0 0
      %563 = vmatpush1.bf16.msra.mxu0 0
      %564 = vmatprep.subr.bf16.mxu0 0
      %565 = vmatpush1.bf16.msra.mxu0 0
      %566 = vmatprep.mubr.bf16.mxu0 0
      %567 = vmatmul.mubr.bf16.gmra.mrb[0].mxu0 %v532
      %v568 = vpop.f32.mrb[0].mxu0
      %v569 = vadd.f32 0.0, %v568
      %v570 = vpop.f32.mrb[0].mxu0
      %v571 = vadd.f32 0.0, %v570
      %v572 = vpop.f32.mrb[0].mxu0
      %v573 = vpop.f32.mrb[0].mxu0
      %574 = vdwg.mxu0
      %v577 = vunpack.c.l.b16 %v514
      %v578 = vunpack.c.h.b16 %v514
      %v579 = vunpack.c.l.b16 %v515
      %v580 = vunpack.c.h.b16 %v515
      %v581 = vpack.c.b16 %v579, %v577
      %v582 = vpack.c.b16 %v580, %v578
      %v586 = vsel %vm327, %v513, 0
      %588 = vmatprep.subr.bf16.mxu0 %v582
      %589 = vmatpush1.bf16.msra.mxu0 %v581
      %590 = vmatprep.subr.bf16.mxu0 0
      %591 = vmatpush1.bf16.msra.mxu0 0
      %592 = vmatprep.subr.bf16.mxu0 0
      %593 = vmatpush1.bf16.msra.mxu0 0
      %594 = vmatprep.subr.bf16.mxu0 0
      %595 = vmatpush1.bf16.msra.mxu0 0
      %596 = vmatprep.subr.bf16.mxu0 0
      %597 = vmatpush1.bf16.msra.mxu0 0
      %598 = vmatprep.subr.bf16.mxu0 0
      %599 = vmatpush1.bf16.msra.mxu0 0
      %600 = vmatprep.subr.bf16.mxu0 0
      %601 = vmatpush1.bf16.msra.mxu0 0
      %602 = vmatprep.subr.bf16.mxu0 0
      %603 = vmatpush1.bf16.msra.mxu0 0
      %604 = vmatprep.subr.bf16.mxu0 0
      %605 = vmatpush1.bf16.msra.mxu0 0
      %606 = vmatprep.subr.bf16.mxu0 0
      %607 = vmatpush1.bf16.msra.mxu0 0
      %608 = vmatprep.subr.bf16.mxu0 0
      %609 = vmatpush1.bf16.msra.mxu0 0
      %610 = vmatprep.subr.bf16.mxu0 0
      %611 = vmatpush1.bf16.msra.mxu0 0
      %612 = vmatprep.subr.bf16.mxu0 0
      %613 = vmatpush1.bf16.msra.mxu0 0
      %614 = vmatprep.subr.bf16.mxu0 0
      %615 = vmatpush1.bf16.msra.mxu0 0
      %616 = vmatprep.subr.bf16.mxu0 0
      %617 = vmatpush1.bf16.msra.mxu0 0
      %618 = vmatprep.subr.bf16.mxu0 0
      %619 = vmatpush1.bf16.msra.mxu0 0
      %620 = vmatprep.mubr.bf16.mxu0 0
      %621 = vmatmul.mubr.bf16.gmra.mrb[0].mxu0 %v586
      %v622 = vpop.f32.mrb[0].mxu0
      %v623 = vadd.f32 %v569, %v622
      %v624 = vpop.f32.mrb[0].mxu0
      %v625 = vadd.f32 %v571, %v624
      %v626 = vpop.f32.mrb[0].mxu0
      %v627 = vpop.f32.mrb[0].mxu0
      %628 = vdwg.mxu0
      %v629 = vld [vmem:[%s300 + $0x1] sm:$0xf]
      %v630 = vpack.c.bf16 %v629, %v629
      %v631 = vld [vmem:[%s429] sm:$0xff]
      %v632 = vld [vmem:[%s429 + $0x8] sm:$0xff]
      %v635 = vunpack.c.l.b16 %v631
      %v636 = vunpack.c.h.b16 %v631
      %v637 = vunpack.c.l.b16 %v632
      %v638 = vunpack.c.h.b16 %v632
      %v639 = vpack.c.b16 %v637, %v635
      %v640 = vpack.c.b16 %v638, %v636
      %v644 = vsel %vm327, %v630, 0
      %646 = vmatprep.subr.bf16.mxu0 %v640
      %647 = vmatpush1.bf16.msra.mxu0 %v639
      %648 = vmatprep.subr.bf16.mxu0 0
      %649 = vmatpush1.bf16.msra.mxu0 0
      %650 = vmatprep.subr.bf16.mxu0 0
      %651 = vmatpush1.bf16.msra.mxu0 0
      %652 = vmatprep.subr.bf16.mxu0 0
      %653 = vmatpush1.bf16.msra.mxu0 0
      %654 = vmatprep.subr.bf16.mxu0 0
      %655 = vmatpush1.bf16.msra.mxu0 0
      %656 = vmatprep.subr.bf16.mxu0 0
      %657 = vmatpush1.bf16.msra.mxu0 0
      %658 = vmatprep.subr.bf16.mxu0 0
      %659 = vmatpush1.bf16.msra.mxu0 0
      %660 = vmatprep.subr.bf16.mxu0 0
      %661 = vmatpush1.bf16.msra.mxu0 0
      %662 = vmatprep.subr.bf16.mxu0 0
      %663 = vmatpush1.bf16.msra.mxu0 0
      %664 = vmatprep.subr.bf16.mxu0 0
      %665 = vmatpush1.bf16.msra.mxu0 0
      %666 = vmatprep.subr.bf16.mxu0 0
      %667 = vmatpush1.bf16.msra.mxu0 0
      %668 = vmatprep.subr.bf16.mxu0 0
      %669 = vmatpush1.bf16.msra.mxu0 0
      %670 = vmatprep.subr.bf16.mxu0 0
      %671 = vmatpush1.bf16.msra.mxu0 0
      %672 = vmatprep.subr.bf16.mxu0 0
      %673 = vmatpush1.bf16.msra.mxu0 0
      %674 = vmatprep.subr.bf16.mxu0 0
      %675 = vmatpush1.bf16.msra.mxu0 0
      %676 = vmatprep.subr.bf16.mxu0 0
      %677 = vmatpush1.bf16.msra.mxu0 0
      %678 = vmatprep.mubr.bf16.mxu0 0
      %679 = vmatmul.mubr.bf16.gmra.mrb[0].mxu0 %v644
      %v680 = vpop.f32.mrb[0].mxu0
      %v681 = vadd.f32 0.0, %v680
      %v682 = vpop.f32.mrb[0].mxu0
      %v683 = vadd.f32 0.0, %v682
      %v684 = vpop.f32.mrb[0].mxu0
      %v685 = vpop.f32.mrb[0].mxu0
      %686 = vdwg.mxu0
      %v687 = vadd.f32 %v623, %v681
      %v688 = vadd.f32 %v625, %v683
      %v689 = vld [vmem:[%s2] sm:$0x3]
      %v691 = vlaneseq
      %v692 = vshrl.u32 %v691, 7
      %v693 = vsub.s32 0, %v692
      %v694 = vrot.slane %v689, %v693
      %v695 = vlaneseq
      %v696 = vshrl.u32 %v695, 7
      %v697 = vsub.s32 1, %v696
      %v698 = vrot.slane %v689, %v697
      %v701 = vadd.f32 %v687, %v694
      %v702 = vadd.f32 %v688, %v698
      %v703 = vmax.f32 %v701, 0.0
      %v704 = vmax.f32 %v702, 0.0
      %v707 = vcombine.low %v703, %v704
      %s709 = scalar_lea.vmem [#allocation2], 8
      %710 = vst.msk [vmem:[%s709] sm:$0xff] %vm510, %v707
      %v711 = vld [vmem:[#allocation2] sm:$0x77]
      %v713 = vcombine.high %v711, %v711
      %v715 = vpack.c.bf16 %v711, %v711
      %v716 = vpack.c.bf16 %v713, %v713
      %v717 = vld [vmem:[%s3] sm:$0xf]
      %v718 = vld [vmem:[%s3 + $0x4] sm:$0xf]
      %v719 = vld [vmem:[%s3 + $0x8] sm:$0xf]
      %v720 = vld [vmem:[%s3 + $0xc] sm:$0xf]
      %v721 = vld [vmem:[%s3 + $0x10] sm:$0xf]
      %v722 = vld [vmem:[%s3 + $0x14] sm:$0xf]
      %v723 = vld [vmem:[%s3 + $0x18] sm:$0xf]
      %v724 = vld [vmem:[%s3 + $0x1c] sm:$0xf]
      %v725 = vld [vmem:[%s3 + $0x20] sm:$0xf]
      %v726 = vld [vmem:[%s3 + $0x24] sm:$0xf]
      %v727 = vld [vmem:[%s3 + $0x28] sm:$0xf]
      %v728 = vld [vmem:[%s3 + $0x2c] sm:$0xf]
      %v729 = vld [vmem:[%s3 + $0x30] sm:$0xf]
      %v730 = vld [vmem:[%s3 + $0x34] sm:$0xf]
      %v731 = vld [vmem:[%s3 + $0x38] sm:$0xf]
      %v732 = vld [vmem:[%s3 + $0x3c] sm:$0xf]
      %v733 = vld [vmem:[%s3 + $0x40] sm:$0xf]
      %v734 = vld [vmem:[%s3 + $0x44] sm:$0xf]
      %v735 = vld [vmem:[%s3 + $0x48] sm:$0xf]
      %v736 = vld [vmem:[%s3 + $0x4c] sm:$0xf]
      %v737 = vld [vmem:[%s3 + $0x50] sm:$0xf]
      %v738 = vld [vmem:[%s3 + $0x54] sm:$0xf]
      %v739 = vld [vmem:[%s3 + $0x58] sm:$0xf]
      %v740 = vld [vmem:[%s3 + $0x5c] sm:$0xf]
      %v741 = vld [vmem:[%s3 + $0x60] sm:$0xf]
      %v742 = vld [vmem:[%s3 + $0x64] sm:$0xf]
      %v743 = vld [vmem:[%s3 + $0x68] sm:$0xf]
      %v744 = vld [vmem:[%s3 + $0x6c] sm:$0xf]
      %v745 = vld [vmem:[%s709] sm:$0x77]
      %v747 = vcombine.high %v745, %v745
      %v749 = vpack.c.bf16 %v745, %v745
      %v750 = vpack.c.bf16 %v747, %v747
      %s751 = scalar_lea.vmem %s3, 112
      %v752 = vld [vmem:[%s751] sm:$0xf]
      %v753 = vld [vmem:[%s751 + $0x4] sm:$0xf]
      %v754 = vld [vmem:[%s751 + $0x8] sm:$0xf]
      %v755 = vld [vmem:[%s751 + $0xc] sm:$0xf]
      %v756 = vld [vmem:[%s751 + $0x10] sm:$0xf]
      %v757 = vld [vmem:[%s751 + $0x14] sm:$0xf]
      %v758 = vld [vmem:[%s751 + $0x18] sm:$0xf]
      %v759 = vld [vmem:[%s751 + $0x1c] sm:$0xf]
      %v760 = vld [vmem:[%s751 + $0x20] sm:$0xf]
      %v761 = vld [vmem:[%s751 + $0x24] sm:$0xf]
      %v762 = vld [vmem:[%s751 + $0x28] sm:$0xf]
      %v763 = vld [vmem:[%s751 + $0x2c] sm:$0xf]
      %v764 = vld [vmem:[%s751 + $0x30] sm:$0xf]
      %v765 = vld [vmem:[%s751 + $0x34] sm:$0xf]
      %v766 = vld [vmem:[%s751 + $0x38] sm:$0xf]
      %v767 = vld [vmem:[%s751 + $0x3c] sm:$0xf]
      %v768 = vld [vmem:[%s751 + $0x40] sm:$0xf]
      %v769 = vld [vmem:[%s751 + $0x44] sm:$0xf]
      %v770 = vld [vmem:[%s751 + $0x48] sm:$0xf]
      %v771 = vld [vmem:[%s751 + $0x4c] sm:$0xf]
      %v772 = vld [vmem:[%s751 + $0x50] sm:$0xf]
      %v773 = vld [vmem:[%s751 + $0x54] sm:$0xf]
      %v774 = vld [vmem:[%s751 + $0x58] sm:$0xf]
      %v775 = vld [vmem:[%s751 + $0x5c] sm:$0xf]
      %v776 = vld [vmem:[%s751 + $0x60] sm:$0xf]
      %v777 = vld [vmem:[%s751 + $0x64] sm:$0xf]
      %v778 = vld [vmem:[%s751 + $0x68] sm:$0xf]
      %v779 = vld [vmem:[%s751 + $0x6c] sm:$0xf]
      %v808 = vunpack.c.l.b16 %v752
      %v809 = vunpack.c.l.b16 %v753
      %v810 = vunpack.c.l.b16 %v754
      %v811 = vunpack.c.l.b16 %v755
      %v812 = vunpack.c.l.b16 %v756
      %v813 = vunpack.c.l.b16 %v757
      %v814 = vunpack.c.l.b16 %v758
      %v815 = vunpack.c.l.b16 %v759
      %v816 = vunpack.c.l.b16 %v760
      %v817 = vunpack.c.l.b16 %v761
      %v818 = vunpack.c.l.b16 %v762
      %v819 = vunpack.c.l.b16 %v763
      %v820 = vunpack.c.l.b16 %v764
      %v821 = vunpack.c.l.b16 %v765
      %v822 = vunpack.c.l.b16 %v766
      %v823 = vunpack.c.l.b16 %v767
      %v824 = vunpack.c.l.b16 %v768
      %v825 = vunpack.c.l.b16 %v769
      %v826 = vunpack.c.l.b16 %v770
      %v827 = vunpack.c.l.b16 %v771
      %v828 = vunpack.c.l.b16 %v772
      %v829 = vunpack.c.l.b16 %v773
      %v830 = vunpack.c.l.b16 %v774
      %v831 = vunpack.c.l.b16 %v775
      %v832 = vunpack.c.l.b16 %v776
      %v833 = vunpack.c.l.b16 %v777
      %v834 = vunpack.c.l.b16 %v778
      %v835 = vunpack.c.l.b16 %v779
      %v836 = vpack.c.b16 %v809, %v808
      %v837 = vpack.c.b16 %v811, %v810
      %v838 = vpack.c.b16 %v813, %v812
      %v839 = vpack.c.b16 %v815, %v814
      %v840 = vpack.c.b16 %v817, %v816
      %v841 = vpack.c.b16 %v819, %v818
      %v842 = vpack.c.b16 %v821, %v820
      %v843 = vpack.c.b16 %v823, %v822
      %v844 = vpack.c.b16 %v825, %v824
      %v845 = vpack.c.b16 %v827, %v826
      %v846 = vpack.c.b16 %v829, %v828
      %v847 = vpack.c.b16 %v831, %v830
      %v848 = vpack.c.b16 %v833, %v832
      %v849 = vpack.c.b16 %v835, %v834
      %vm864 = vcmask 785408
      %v866 = vsel %vm864, %v750, 0
      %868 = vmatprep.subr.bf16.mxu0 0
      %869 = vmatpush1.bf16.msra.mxu0 %v836
      %870 = vmatprep.subr.bf16.mxu0 0
      %871 = vmatpush1.bf16.msra.mxu0 %v837
      %872 = vmatprep.subr.bf16.mxu0 0
      %873 = vmatpush1.bf16.msra.mxu0 %v838
      %874 = vmatprep.subr.bf16.mxu0 0
      %875 = vmatpush1.bf16.msra.mxu0 %v839
      %876 = vmatprep.subr.bf16.mxu0 0
      %877 = vmatpush1.bf16.msra.mxu0 %v840
      %878 = vmatprep.subr.bf16.mxu0 0
      %879 = vmatpush1.bf16.msra.mxu0 %v841
      %880 = vmatprep.subr.bf16.mxu0 0
      %881 = vmatpush1.bf16.msra.mxu0 %v842
      %882 = vmatprep.subr.bf16.mxu0 0
      %883 = vmatpush1.bf16.msra.mxu0 %v843
      %884 = vmatprep.subr.bf16.mxu0 0
      %885 = vmatpush1.bf16.msra.mxu0 %v844
      %886 = vmatprep.subr.bf16.mxu0 0
      %887 = vmatpush1.bf16.msra.mxu0 %v845
      %888 = vmatprep.subr.bf16.mxu0 0
      %889 = vmatpush1.bf16.msra.mxu0 %v846
      %890 = vmatprep.subr.bf16.mxu0 0
      %891 = vmatpush1.bf16.msra.mxu0 %v847
      %892 = vmatprep.subr.bf16.mxu0 0
      %893 = vmatpush1.bf16.msra.mxu0 %v848
      %894 = vmatprep.subr.bf16.mxu0 0
      %895 = vmatpush1.bf16.msra.mxu0 %v849
      %896 = vmatprep.subr.bf16.mxu0 0
      %897 = vmatpush1.bf16.msra.mxu0 0
      %898 = vmatprep.subr.bf16.mxu0 0
      %899 = vmatpush1.bf16.msra.mxu0 0
      %900 = vmatprep.mubr.bf16.mxu0 %v866
      %901 = vmatmul.mubr.bf16.gmra.mrb[0].mxu0 %v749
      %v902 = vpop.f32.mrb[0].mxu0
      %v903 = vadd.f32 0.0, %v902
      %v904 = vpop.f32.mrb[0].mxu0
      %v905 = vpop.f32.mrb[0].mxu0
      %v906 = vpop.f32.mrb[0].mxu0
      %907 = vdwg.mxu0
      %v936 = vunpack.c.l.b16 %v717
      %v937 = vunpack.c.l.b16 %v718
      %v938 = vunpack.c.l.b16 %v719
      %v939 = vunpack.c.l.b16 %v720
      %v940 = vunpack.c.l.b16 %v721
      %v941 = vunpack.c.l.b16 %v722
      %v942 = vunpack.c.l.b16 %v723
      %v943 = vunpack.c.l.b16 %v724
      %v944 = vunpack.c.l.b16 %v725
      %v945 = vunpack.c.l.b16 %v726
      %v946 = vunpack.c.l.b16 %v727
      %v947 = vunpack.c.l.b16 %v728
      %v948 = vunpack.c.l.b16 %v729
      %v949 = vunpack.c.l.b16 %v730
      %v950 = vunpack.c.l.b16 %v731
      %v951 = vunpack.c.l.b16 %v732
      %v952 = vunpack.c.l.b16 %v733
      %v953 = vunpack.c.l.b16 %v734
      %v954 = vunpack.c.l.b16 %v735
      %v955 = vunpack.c.l.b16 %v736
      %v956 = vunpack.c.l.b16 %v737
      %v957 = vunpack.c.l.b16 %v738
      %v958 = vunpack.c.l.b16 %v739
      %v959 = vunpack.c.l.b16 %v740
      %v960 = vunpack.c.l.b16 %v741
      %v961 = vunpack.c.l.b16 %v742
      %v962 = vunpack.c.l.b16 %v743
      %v963 = vunpack.c.l.b16 %v744
      %v964 = vpack.c.b16 %v937, %v936
      %v965 = vpack.c.b16 %v939, %v938
      %v966 = vpack.c.b16 %v941, %v940
      %v967 = vpack.c.b16 %v943, %v942
      %v968 = vpack.c.b16 %v945, %v944
      %v969 = vpack.c.b16 %v947, %v946
      %v970 = vpack.c.b16 %v949, %v948
      %v971 = vpack.c.b16 %v951, %v950
      %v972 = vpack.c.b16 %v953, %v952
      %v973 = vpack.c.b16 %v955, %v954
      %v974 = vpack.c.b16 %v957, %v956
      %v975 = vpack.c.b16 %v959, %v958
      %v976 = vpack.c.b16 %v961, %v960
      %v977 = vpack.c.b16 %v963, %v962
      %v993 = vsel %vm864, %v716, 0
      %995 = vmatprep.subr.bf16.mxu0 0
      %996 = vmatpush1.bf16.msra.mxu0 %v964
      %997 = vmatprep.subr.bf16.mxu0 0
      %998 = vmatpush1.bf16.msra.mxu0 %v965
      %999 = vmatprep.subr.bf16.mxu0 0
      %1000 = vmatpush1.bf16.msra.mxu0 %v966
      %1001 = vmatprep.subr.bf16.mxu0 0
      %1002 = vmatpush1.bf16.msra.mxu0 %v967
      %1003 = vmatprep.subr.bf16.mxu0 0
      %1004 = vmatpush1.bf16.msra.mxu0 %v968
      %1005 = vmatprep.subr.bf16.mxu0 0
      %1006 = vmatpush1.bf16.msra.mxu0 %v969
      %1007 = vmatprep.subr.bf16.mxu0 0
      %1008 = vmatpush1.bf16.msra.mxu0 %v970
      %1009 = vmatprep.subr.bf16.mxu0 0
      %1010 = vmatpush1.bf16.msra.mxu0 %v971
      %1011 = vmatprep.subr.bf16.mxu0 0
      %1012 = vmatpush1.bf16.msra.mxu0 %v972
      %1013 = vmatprep.subr.bf16.mxu0 0
      %1014 = vmatpush1.bf16.msra.mxu0 %v973
      %1015 = vmatprep.subr.bf16.mxu0 0
      %1016 = vmatpush1.bf16.msra.mxu0 %v974
      %1017 = vmatprep.subr.bf16.mxu0 0
      %1018 = vmatpush1.bf16.msra.mxu0 %v975
      %1019 = vmatprep.subr.bf16.mxu0 0
      %1020 = vmatpush1.bf16.msra.mxu0 %v976
      %1021 = vmatprep.subr.bf16.mxu0 0
      %1022 = vmatpush1.bf16.msra.mxu0 %v977
      %1023 = vmatprep.subr.bf16.mxu0 0
      %1024 = vmatpush1.bf16.msra.mxu0 0
      %1025 = vmatprep.subr.bf16.mxu0 0
      %1026 = vmatpush1.bf16.msra.mxu0 0
      %1027 = vmatprep.mubr.bf16.mxu0 %v993
      %1028 = vmatmul.mubr.bf16.gmra.mrb[0].mxu0 %v715
      %v1029 = vpop.f32.mrb[0].mxu0
      %v1030 = vadd.f32 %v903, %v1029
      %v1031 = vpop.f32.mrb[0].mxu0
      %v1032 = vpop.f32.mrb[0].mxu0
      %v1033 = vpop.f32.mrb[0].mxu0
      %1034 = vdwg.mxu0
      %v1035 = vld [vmem:[#allocation2] sm:$0xee]
      %v1037 = vcombine.high %v1035, %v1035
      %v1039 = vpack.c.bf16 %v1035, %v1035
      %v1040 = vpack.c.bf16 %v1037, %v1037
      %s1041 = scalar_lea.vmem %s3, 224
      %v1042 = vld [vmem:[%s1041] sm:$0xf]
      %v1043 = vld [vmem:[%s1041 + $0x4] sm:$0xf]
      %v1044 = vld [vmem:[%s1041 + $0x8] sm:$0xf]
      %v1045 = vld [vmem:[%s1041 + $0xc] sm:$0xf]
      %v1046 = vld [vmem:[%s1041 + $0x10] sm:$0xf]
      %v1047 = vld [vmem:[%s1041 + $0x14] sm:$0xf]
      %v1048 = vld [vmem:[%s1041 + $0x18] sm:$0xf]
      %v1049 = vld [vmem:[%s1041 + $0x1c] sm:$0xf]
      %v1050 = vld [vmem:[%s1041 + $0x20] sm:$0xf]
      %v1051 = vld [vmem:[%s1041 + $0x24] sm:$0xf]
      %v1052 = vld [vmem:[%s1041 + $0x28] sm:$0xf]
      %v1053 = vld [vmem:[%s1041 + $0x2c] sm:$0xf]
      %v1054 = vld [vmem:[%s1041 + $0x30] sm:$0xf]
      %v1055 = vld [vmem:[%s1041 + $0x34] sm:$0xf]
      %v1056 = vld [vmem:[%s1041 + $0x38] sm:$0xf]
      %v1057 = vld [vmem:[%s1041 + $0x3c] sm:$0xf]
      %v1058 = vld [vmem:[%s1041 + $0x40] sm:$0xf]
      %v1059 = vld [vmem:[%s1041 + $0x44] sm:$0xf]
      %v1060 = vld [vmem:[%s1041 + $0x48] sm:$0xf]
      %v1061 = vld [vmem:[%s1041 + $0x4c] sm:$0xf]
      %v1062 = vld [vmem:[%s1041 + $0x50] sm:$0xf]
      %v1063 = vld [vmem:[%s1041 + $0x54] sm:$0xf]
      %v1064 = vld [vmem:[%s1041 + $0x58] sm:$0xf]
      %v1065 = vld [vmem:[%s1041 + $0x5c] sm:$0xf]
      %v1066 = vld [vmem:[%s1041 + $0x60] sm:$0xf]
      %v1067 = vld [vmem:[%s1041 + $0x64] sm:$0xf]
      %v1068 = vld [vmem:[%s1041 + $0x68] sm:$0xf]
      %v1069 = vld [vmem:[%s1041 + $0x6c] sm:$0xf]
      %v1071 = vshrl.u32 %v1039, 16
      %v1073 = vshll.u32 %v1039, 16
      %v1075 = vrot.slane %v1073, 1
      %v1076 = vor.u32 %v1071, %v1075
      %v1078 = vshrl.u32 %v1040, 16
      %v1080 = vshll.u32 %v1040, 16
      %v1082 = vrot.slane %v1080, 1
      %v1083 = vor.u32 %v1078, %v1082
      %v1113 = vunpack.c.l.b16 %v1042
      %v1114 = vunpack.c.l.b16 %v1043
      %v1115 = vunpack.c.l.b16 %v1044
      %v1116 = vunpack.c.l.b16 %v1045
      %v1117 = vunpack.c.l.b16 %v1046
      %v1118 = vunpack.c.l.b16 %v1047
      %v1119 = vunpack.c.l.b16 %v1048
      %v1120 = vunpack.c.l.b16 %v1049
      %v1121 = vunpack.c.l.b16 %v1050
      %v1122 = vunpack.c.l.b16 %v1051
      %v1123 = vunpack.c.l.b16 %v1052
      %v1124 = vunpack.c.l.b16 %v1053
      %v1125 = vunpack.c.l.b16 %v1054
      %v1126 = vunpack.c.l.b16 %v1055
      %v1127 = vunpack.c.l.b16 %v1056
      %v1128 = vunpack.c.l.b16 %v1057
      %v1129 = vunpack.c.l.b16 %v1058
      %v1130 = vunpack.c.l.b16 %v1059
      %v1131 = vunpack.c.l.b16 %v1060
      %v1132 = vunpack.c.l.b16 %v1061
      %v1133 = vunpack.c.l.b16 %v1062
      %v1134 = vunpack.c.l.b16 %v1063
      %v1135 = vunpack.c.l.b16 %v1064
      %v1136 = vunpack.c.l.b16 %v1065
      %v1137 = vunpack.c.l.b16 %v1066
      %v1138 = vunpack.c.l.b16 %v1067
      %v1139 = vunpack.c.l.b16 %v1068
      %v1140 = vunpack.c.l.b16 %v1069
      %v1141 = vpack.c.b16 %v1114, %v1113
      %v1142 = vpack.c.b16 %v1116, %v1115
      %v1143 = vpack.c.b16 %v1118, %v1117
      %v1144 = vpack.c.b16 %v1120, %v1119
      %v1145 = vpack.c.b16 %v1122, %v1121
      %v1146 = vpack.c.b16 %v1124, %v1123
      %v1147 = vpack.c.b16 %v1126, %v1125
      %v1148 = vpack.c.b16 %v1128, %v1127
      %v1149 = vpack.c.b16 %v1130, %v1129
      %v1150 = vpack.c.b16 %v1132, %v1131
      %v1151 = vpack.c.b16 %v1134, %v1133
      %v1152 = vpack.c.b16 %v1136, %v1135
      %v1153 = vpack.c.b16 %v1138, %v1137
      %v1154 = vpack.c.b16 %v1140, %v1139
      %v1170 = vsel %vm864, %v1083, 0
      %1172 = vmatprep.subr.bf16.mxu0 0
      %1173 = vmatpush1.bf16.msra.mxu0 %v1141
      %1174 = vmatprep.subr.bf16.mxu0 0
      %1175 = vmatpush1.bf16.msra.mxu0 %v1142
      %1176 = vmatprep.subr.bf16.mxu0 0
      %1177 = vmatpush1.bf16.msra.mxu0 %v1143
      %1178 = vmatprep.subr.bf16.mxu0 0
      %1179 = vmatpush1.bf16.msra.mxu0 %v1144
      %1180 = vmatprep.subr.bf16.mxu0 0
      %1181 = vmatpush1.bf16.msra.mxu0 %v1145
      %1182 = vmatprep.subr.bf16.mxu0 0
      %1183 = vmatpush1.bf16.msra.mxu0 %v1146
      %1184 = vmatprep.subr.bf16.mxu0 0
      %1185 = vmatpush1.bf16.msra.mxu0 %v1147
      %1186 = vmatprep.subr.bf16.mxu0 0
      %1187 = vmatpush1.bf16.msra.mxu0 %v1148
      %1188 = vmatprep.subr.bf16.mxu0 0
      %1189 = vmatpush1.bf16.msra.mxu0 %v1149
      %1190 = vmatprep.subr.bf16.mxu0 0
      %1191 = vmatpush1.bf16.msra.mxu0 %v1150
      %1192 = vmatprep.subr.bf16.mxu0 0
      %1193 = vmatpush1.bf16.msra.mxu0 %v1151
      %1194 = vmatprep.subr.bf16.mxu0 0
      %1195 = vmatpush1.bf16.msra.mxu0 %v1152
      %1196 = vmatprep.subr.bf16.mxu0 0
      %1197 = vmatpush1.bf16.msra.mxu0 %v1153
      %1198 = vmatprep.subr.bf16.mxu0 0
      %1199 = vmatpush1.bf16.msra.mxu0 %v1154
      %1200 = vmatprep.subr.bf16.mxu0 0
      %1201 = vmatpush1.bf16.msra.mxu0 0
      %1202 = vmatprep.subr.bf16.mxu0 0
      %1203 = vmatpush1.bf16.msra.mxu0 0
      %1204 = vmatprep.mubr.bf16.mxu0 %v1170
      %1205 = vmatmul.mubr.bf16.gmra.mrb[0].mxu0 %v1076
      %v1206 = vpop.f32.mrb[0].mxu0
      %v1207 = vadd.f32 0.0, %v1206
      %v1208 = vpop.f32.mrb[0].mxu0
      %v1209 = vpop.f32.mrb[0].mxu0
      %v1210 = vpop.f32.mrb[0].mxu0
      %1211 = vdwg.mxu0
      %v1212 = vadd.f32 %v1030, %v1207
      %v1213 = vld [vmem:[%s4] sm:$0x1]
      %v1215 = vlaneseq
      %v1216 = vshrl.u32 %v1215, 7
      %v1217 = vsub.s32 0, %v1216
      %v1218 = vrot.slane %v1213, %v1217
      %v1220 = vadd.f32 %v1212, %v1218
      %v1221 = vmax.f32 %v1220, 0.0
      %v1222 = vpack.c.bf16 %v1221, %v1221
      %v1223 = vld [vmem:[%s5] sm:$0xff]
      %v1224 = vld [vmem:[%s5 + $0x8] sm:$0xff]
      %v1225 = vld [vmem:[%s5 + $0x10] sm:$0xff]
      %v1226 = vld [vmem:[%s5 + $0x18] sm:$0xff]
      %v1227 = vld [vmem:[%s5 + $0x20] sm:$0xff]
      %v1228 = vld [vmem:[%s5 + $0x28] sm:$0xff]
      %v1229 = vld [vmem:[%s5 + $0x30] sm:$0xff]
      %v1230 = vld [vmem:[%s5 + $0x38] sm:$0xff]
      %v1231 = vld [vmem:[%s5 + $0x40] sm:$0xff]
      %v1232 = vld [vmem:[%s5 + $0x48] sm:$0xff]
      %v1233 = vld [vmem:[%s5 + $0x50] sm:$0xff]
      %v1234 = vld [vmem:[%s5 + $0x58] sm:$0xff]
      %v1235 = vld [vmem:[%s6] sm:$0x3]
      %v1237 = vlaneseq
      %v1238 = vshrl.u32 %v1237, 7
      %v1239 = vsub.s32 0, %v1238
      %v1240 = vrot.slane %v1235, %v1239
      %v1241 = vlaneseq
      %v1242 = vshrl.u32 %v1241, 7
      %v1243 = vsub.s32 1, %v1242
      %v1244 = vrot.slane %v1235, %v1243
      %v1259 = vunpack.c.l.b16 %v1223
      %v1260 = vunpack.c.h.b16 %v1223
      %v1261 = vunpack.c.l.b16 %v1224
      %v1262 = vunpack.c.h.b16 %v1224
      %v1263 = vunpack.c.l.b16 %v1225
      %v1264 = vunpack.c.h.b16 %v1225
      %v1265 = vunpack.c.l.b16 %v1226
      %v1266 = vunpack.c.h.b16 %v1226
      %v1267 = vunpack.c.l.b16 %v1227
      %v1268 = vunpack.c.h.b16 %v1227
      %v1269 = vunpack.c.l.b16 %v1228
      %v1270 = vunpack.c.h.b16 %v1228
      %v1271 = vunpack.c.l.b16 %v1229
      %v1272 = vunpack.c.h.b16 %v1229
      %v1273 = vunpack.c.l.b16 %v1230
      %v1274 = vunpack.c.h.b16 %v1230
      %v1275 = vunpack.c.l.b16 %v1231
      %v1276 = vunpack.c.h.b16 %v1231
      %v1277 = vunpack.c.l.b16 %v1232
      %v1278 = vunpack.c.h.b16 %v1232
      %v1279 = vunpack.c.l.b16 %v1233
      %v1280 = vunpack.c.h.b16 %v1233
      %v1281 = vunpack.c.l.b16 %v1234
      %v1282 = vunpack.c.h.b16 %v1234
      %v1283 = vpack.c.b16 %v1261, %v1259
      %v1284 = vpack.c.b16 %v1262, %v1260
      %v1285 = vpack.c.b16 %v1265, %v1263
      %v1286 = vpack.c.b16 %v1266, %v1264
      %v1287 = vpack.c.b16 %v1269, %v1267
      %v1288 = vpack.c.b16 %v1270, %v1268
      %v1289 = vpack.c.b16 %v1273, %v1271
      %v1290 = vpack.c.b16 %v1274, %v1272
      %v1291 = vpack.c.b16 %v1277, %v1275
      %v1292 = vpack.c.b16 %v1278, %v1276
      %v1293 = vpack.c.b16 %v1281, %v1279
      %v1294 = vpack.c.b16 %v1282, %v1280
      %v1308 = vsel %vm864, %v1222, 0
      %1310 = vmatprep.subr.bf16.mxu0 %v1284
      %1311 = vmatpush1.bf16.msra.mxu0 %v1283
      %1312 = vmatprep.subr.bf16.mxu0 %v1286
      %1313 = vmatpush1.bf16.msra.mxu0 %v1285
      %1314 = vmatprep.subr.bf16.mxu0 %v1288
      %1315 = vmatpush1.bf16.msra.mxu0 %v1287
      %1316 = vmatprep.subr.bf16.mxu0 %v1290
      %1317 = vmatpush1.bf16.msra.mxu0 %v1289
      %1318 = vmatprep.subr.bf16.mxu0 %v1292
      %1319 = vmatpush1.bf16.msra.mxu0 %v1291
      %1320 = vmatprep.subr.bf16.mxu0 %v1294
      %1321 = vmatpush1.bf16.msra.mxu0 %v1293
      %1322 = vmatprep.subr.bf16.mxu0 0
      %1323 = vmatpush1.bf16.msra.mxu0 0
      %1324 = vmatprep.subr.bf16.mxu0 0
      %1325 = vmatpush1.bf16.msra.mxu0 0
      %1326 = vmatprep.subr.bf16.mxu0 0
      %1327 = vmatpush1.bf16.msra.mxu0 0
      %1328 = vmatprep.subr.bf16.mxu0 0
      %1329 = vmatpush1.bf16.msra.mxu0 0
      %1330 = vmatprep.subr.bf16.mxu0 0
      %1331 = vmatpush1.bf16.msra.mxu0 0
      %1332 = vmatprep.subr.bf16.mxu0 0
      %1333 = vmatpush1.bf16.msra.mxu0 0
      %1334 = vmatprep.subr.bf16.mxu0 0
      %1335 = vmatpush1.bf16.msra.mxu0 0
      %1336 = vmatprep.subr.bf16.mxu0 0
      %1337 = vmatpush1.bf16.msra.mxu0 0
      %1338 = vmatprep.subr.bf16.mxu0 0
      %1339 = vmatpush1.bf16.msra.mxu0 0
      %1340 = vmatprep.subr.bf16.mxu0 0
      %1341 = vmatpush1.bf16.msra.mxu0 0
      %1342 = vmatprep.mubr.bf16.mxu0 0
      %1343 = vmatmul.mubr.bf16.gmra.mrb[0].mxu0 %v1308
      %v1344 = vpop.f32.mrb[0].mxu0
      %v1345 = vadd.f32 %v1240, %v1344
      %v1346 = vpop.f32.mrb[0].mxu0
      %v1347 = vadd.f32 %v1244, %v1346
      %v1348 = vpop.f32.mrb[0].mxu0
      %v1349 = vpop.f32.mrb[0].mxu0
      %1350 = vdwg.mxu0
      %v1351 = vld [vmem:[%s7] sm:$0x77]
      %v1353 = vcombine.high %v1351, %v1351
      %v1355 = vadd.f32 %v1345, %v1351
      %v1356 = vadd.f32 %v1347, %v1353
      %v1359 = vcombine.low %v1355, %v1356
      %1361 = vst [vmem:[%s305] sm:$0x77] %v1359
      %p1362 = scmp.lt.s32.totalorder %s19, 1
      %s1363 = scalar_select %p1362, %s19, 1
      %s1364 = smul.addr %s1363, 2
      %s1365 = smul.addr %s1364, 4
      %s1366 = scalar_lea.vmem %s8, %s1365
      // Predicated region
      $region53: #{conv2d_subsampling.1} parent=51 // pred_check
        %p1367 = pneg %p210
      $region54: #{conv2d_subsampling.1} parent=51 // pred_check_branch
        %1369 = sbr.rel (%p1367) target = $region56
      $region55: #{conv2d_subsampling.1} parent=51 // pred_region
        _
      $region56: #{conv2d_subsampling.1} parent=51 // pred_fallthru
        _
    $region52: #{conv2d_subsampling.1} parent=5 // pred_fallthru
      _
    %p1370 = scmp.le.s32.totalorder 2, %s14
    // Predicated region
    $region57: #{conv2d_subsampling.1} parent=5 // pred_check
      %p1371 = pneg %p1370
    $region58: #{conv2d_subsampling.1} parent=5 // pred_check_branch
      %1373 = sbr.rel (%p1371) target = $region60
    $region59: #{conv2d_subsampling.1} parent=5 // pred_region
      %s1374 = ssub.s32 %s14, 2
      // Predicated region
      $region61: #{conv2d_subsampling.1} parent=59 // pred_check
        %p1375 = pneg %p216
      $region62: #{conv2d_subsampling.1} parent=59 // pred_check_branch
        %1377 = sbr.rel (%p1375) target = $region64
      $region63: #{conv2d_subsampling.1} parent=59 // pred_region
        %p1378 = scmp.lt.s32.totalorder %s20, 1
        %s1379 = scalar_select %p1378, %s20, 1
        %s1380 = smul.addr %s1379, 2
        %s1381 = smul.addr %s1380, 4
        %s1382 = scalar_lea.vmem %s8, %s1381
      $region64: #{conv2d_subsampling.1} parent=59 // pred_fallthru
        _
    $region60: #{conv2d_subsampling.1} parent=5 // pred_fallthru
      _
  $region6: #{conv2d_subsampling.1} parent=0 // loop_footer
    %s18 = sadd.s32 1, %s14
  $region7: #{conv2d_subsampling.1} parent=0 // loop_footer_branch
    %13 = sbr.rel target = $region3
  $region8: #{conv2d_subsampling.1} parent=0 // loop_exit
    _

</llo_original>
